<compile_context>
chip_gen: v5e
topology: v5e:2x2
jax: 0.10.0
libtpu: 0.0.40
codegen_flags: <defaults>
</compile_context>

<pallas_src>
import functools

import jax
import jax.numpy as jnp
from jax import lax
from jax.experimental import pallas as pl
from jax.experimental.pallas import tpu as pltpu

_CHUNK = 8  # timesteps per unrolled chunk / per output flush (sublane-aligned)


def _bayes_lstm_kernel(x_ref, wi_ref, wh_ref, b_ref,
                       out_ref, h_ref, c_ref,
                       xg_ref, *, seq_len, hidden, chunk):
    # x_ref : (1, seq, in)     wi_ref: (1, in, 4H)    wh_ref: (1, H, 4H)
    # b_ref : (1, 1, 4H)       out_ref: (1, seq, H)   h_ref/c_ref: (1, 1, H)
    # xg_ref: VMEM scratch (seq, 4H) f32
    H = hidden
    wh = wh_ref[0]                                   # (H, 4H), native dtype
    bias = b_ref[0].astype(jnp.float32)              # (1, 4H)

    # Hoisted input projection for the whole sequence: one big MXU matmul.
    xg_ref[...] = (
        jnp.dot(x_ref[0], wi_ref[0], preferred_element_type=jnp.float32) + bias
    )                                                # (seq, 4H) f32

    def lstm_step(xg_t, h, c):
        # xg_t: (1, 4H) f32,  h/c: (1, H) f32
        gates = xg_t + jnp.dot(h.astype(wh.dtype), wh,
                               preferred_element_type=jnp.float32)   # (1, 4H)
        i = jax.nn.sigmoid(gates[:, 0 * H:1 * H])
        f = jax.nn.sigmoid(gates[:, 1 * H:2 * H])
        g = jnp.tanh(gates[:, 2 * H:3 * H])
        o = jax.nn.sigmoid(gates[:, 3 * H:4 * H])
        c_new = f * c + i * g
        h_new = o * jnp.tanh(c_new)
        return h_new, c_new

    num_full = seq_len // chunk
    rem = seq_len - num_full * chunk

    h0 = jnp.zeros((1, H), jnp.float32)
    c0 = jnp.zeros((1, H), jnp.float32)

    def chunk_body(ci, carry):
        h, c = carry
        base = pl.multiple_of(ci * chunk, chunk)
        rows = []
        for u in range(chunk):                       # unrolled (static)
            xg_t = xg_ref[pl.ds(base + u, 1), :]     # (1, 4H) f32
            h, c = lstm_step(xg_t, h, c)
            rows.append(h)
        # Flush `chunk` hidden states with one sublane-dense (chunk, H) store.
        out_ref[0, pl.ds(base, chunk), :] = (
            jnp.concatenate(rows, axis=0).astype(out_ref.dtype)
        )
        return (h, c)

    h, c = lax.fori_loop(0, num_full, chunk_body, (h0, c0))

    # Static remainder (rem < chunk), handled with static slices.
    for u in range(rem):
        t = num_full * chunk + u
        xg_t = xg_ref[pl.ds(t, 1), :]
        h, c = lstm_step(xg_t, h, c)
        out_ref[0, pl.ds(t, 1), :] = h.astype(out_ref.dtype)

    h_ref[0] = h.astype(h_ref.dtype)
    c_ref[0] = c.astype(c_ref.dtype)


def bayes_lstm_pallas(x, Wi_b, Wh_b, bi_b, bh_b):
    """x: (seq, batch, input); masked batched params as documented above."""
    seq_len, batch, in_dim = x.shape
    hidden = Wh_b.shape[1]
    dtype = x.dtype

    x_k = jnp.transpose(x, (1, 0, 2))               # (batch, seq, in)
    b_b = bi_b + bh_b                               # (batch, 1, 4H) combined bias

    kernel = functools.partial(_bayes_lstm_kernel,
                               seq_len=seq_len, hidden=hidden, chunk=_CHUNK)

    out_shapes = (
        jax.ShapeDtypeStruct((batch, seq_len, hidden), dtype),
        jax.ShapeDtypeStruct((batch, 1, hidden), dtype),
        jax.ShapeDtypeStruct((batch, 1, hidden), dtype),
    )

    grid_spec = pltpu.PrefetchScalarGridSpec(
        num_scalar_prefetch=0,
        grid=(batch,),
        in_specs=[
            pl.BlockSpec((1, seq_len, in_dim), lambda b: (b, 0, 0)),
            pl.BlockSpec((1, in_dim, 4 * hidden), lambda b: (b, 0, 0)),
            pl.BlockSpec((1, hidden, 4 * hidden), lambda b: (b, 0, 0)),
            pl.BlockSpec((1, 1, 4 * hidden), lambda b: (b, 0, 0)),
        ],
        out_specs=[
            pl.BlockSpec((1, seq_len, hidden), lambda b: (b, 0, 0)),
            pl.BlockSpec((1, 1, hidden), lambda b: (b, 0, 0)),
            pl.BlockSpec((1, 1, hidden), lambda b: (b, 0, 0)),
        ],
        scratch_shapes=[pltpu.VMEM((seq_len, 4 * hidden), jnp.float32)],
    )

    # Explicit VMEM budget: double-buffered per-batch blocks + f32 scratch,
    # with 2x headroom, clamped to v7x's 64 MiB physical VMEM.
    itemsize = jnp.dtype(dtype).itemsize
    block_bytes = 2 * itemsize * (
        seq_len * in_dim                 # x block
        + in_dim * 4 * hidden            # Wi block
        + hidden * 4 * hidden            # Wh block
        + 4 * hidden                     # bias block
        + seq_len * hidden               # out block
        + 2 * hidden                     # h, c blocks
    )
    scratch_bytes = seq_len * 4 * hidden * 4
    vmem_limit = int(min(max(2 * (block_bytes + scratch_bytes), 4 << 20), 64 << 20))

    out_b, h_b, c_b = pl.pallas_call(
        kernel,
        out_shape=out_shapes,
        grid_spec=grid_spec,
        compiler_params=pltpu.CompilerParams(
            dimension_semantics=("parallel",),
            vmem_limit_bytes=vmem_limit,
        ),
    )(x_k, Wi_b, Wh_b, b_b)

    output = jnp.transpose(out_b, (1, 0, 2))        # (seq, batch, hidden)
    return output, (h_b[:, 0, :], c_b[:, 0, :])


def bayes_lstm_reference(x, Wi_b, Wh_b, bi_b, bh_b):
    """Pure-JAX replica of the PyTorch BayesLSTM loop (for verification)."""
    seq_len, batch, _ = x.shape
    H = Wh_b.shape[1]
    h = jnp.zeros((batch, 1, H), x.dtype)
    c = jnp.zeros((batch, 1, H), x.dtype)
    outs = []
    for t in range(seq_len):
        xt = x[t][:, None, :]                        # (batch, 1, in)
        gates = (jnp.einsum('bij,bjk->bik', xt, Wi_b) + bi_b
                 + jnp.einsum('bij,bjk->bik', h, Wh_b) + bh_b)
        i = jax.nn.sigmoid(gates[..., 0 * H:1 * H])
        f = jax.nn.sigmoid(gates[..., 1 * H:2 * H])
        g = jnp.tanh(gates[..., 2 * H:3 * H])
        o = jax.nn.sigmoid(gates[..., 3 * H:4 * H])
        c = f * c + i * g
        h = o * jnp.tanh(c)
        outs.append(h[:, 0, :])
    return jnp.stack(outs, axis=0), (h[:, 0, :], c[:, 0, :])


if __name__ == "__main__":
    seq_len, batch, in_dim, hidden = 8, 2, 16, 32
    dropout_prob = 0.5
    dtype = jnp.float32

    key = jax.random.PRNGKey(0)
    kx, kwih, kwhh, kbih, kbhh, km1, km2, km3, km4 = jax.random.split(key, 9)

    # Deterministic parameter init (same shapes as nn.LSTM-style params).
    x = jax.random.normal(kx, (seq_len, batch, in_dim), dtype)
    weight_ih = 0.1 * jax.random.normal(kwih, (4 * hidden, in_dim), dtype)   # rows: i,f,g,o
    weight_hh = 0.1 * jax.random.normal(kwhh, (4 * hidden, hidden), dtype)
    bias_ih = 0.1 * jax.random.normal(kbih, (4 * hidden,), dtype)
    bias_hh = 0.1 * jax.random.normal(kbhh, (4 * hidden,), dtype)

    # Transposed gate weights, concatenated along the output dim (gate order i,f,g,o).
    Wi_T = weight_ih.T                               # (in, 4H)
    Wh_T = weight_hh.T                               # (H, 4H)

    # Per-batch dropout masks: keep where uniform < prob, NO rescaling (as in the
    # PyTorch module).  torch.rand's RNG stream is replaced by JAX's PRNG.
    def make_mask(k, shape):
        return (jax.random.uniform(k, shape) < dropout_prob).astype(dtype)

    Wi_b = make_mask(km1, (batch,) + Wi_T.shape) * Wi_T[None]                 # (B, in, 4H)
    Wh_b = make_mask(km2, (batch,) + Wh_T.shape) * Wh_T[None]                 # (B, H, 4H)
    bi_b = (make_mask(km3, (batch, 4 * hidden)) * bias_ih[None])[:, None, :]  # (B, 1, 4H)
    bh_b = (make_mask(km4, (batch, 4 * hidden)) * bias_hh[None])[:, None, :]  # (B, 1, 4H)

    out, (h_n, c_n) = bayes_lstm_pallas(x, Wi_b, Wh_b, bi_b, bh_b)
    jax.block_until_ready((out, h_n, c_n))

    out_ref, (h_ref, c_ref) = bayes_lstm_reference(x, Wi_b, Wh_b, bi_b, bh_b)
    assert out.shape == (seq_len, batch, hidden)
    assert h_n.shape == (batch, hidden) and c_n.shape == (batch, hidden)
    assert jnp.allclose(out, out_ref, atol=1e-5, rtol=1e-5)
    assert jnp.allclose(h_n, h_ref, atol=1e-5, rtol=1e-5)
    assert jnp.allclose(c_n, c_ref, atol=1e-5, rtol=1e-5)

    print("KERNEL_OK")
</pallas_src>

<mosaic_0001>
module attributes {stable_mosaic.version = 11 : i64} {
  func.func @_bayes_lstm_kernel(%arg0: i32, %arg1: memref<1x8x16xf32, #tpu.memory_space<vmem>>, %arg2: memref<1x16x128xf32, #tpu.memory_space<vmem>>, %arg3: memref<1x32x128xf32, #tpu.memory_space<vmem>>, %arg4: memref<1x1x128xf32, #tpu.memory_space<vmem>>, %arg5: memref<1x8x32xf32, #tpu.memory_space<vmem>>, %arg6: memref<1x1x32xf32, #tpu.memory_space<vmem>>, %arg7: memref<1x1x32xf32, #tpu.memory_space<vmem>>, %arg8: memref<8x128xf32, #tpu.memory_space<vmem>>) attributes {dimension_semantics = [#tpu.dimension_semantics<parallel>], iteration_bounds = array<i64: 2>, scalar_prefetch = 0 : i64, scratch_operands = 1 : i64, tpu.core_type = #tpu.core_type<tc>, window_params = [{transform_indices = @transform_0, window_bounds = array<i64: 1, 8, 16>}, {transform_indices = @transform_1, window_bounds = array<i64: 1, 16, 128>}, {transform_indices = @transform_2, window_bounds = array<i64: 1, 32, 128>}, {transform_indices = @transform_3, window_bounds = array<i64: 1, 1, 128>}, {transform_indices = @transform_4, window_bounds = array<i64: 1, 8, 32>}, {transform_indices = @transform_5, window_bounds = array<i64: 1, 1, 32>}, {transform_indices = @transform_6, window_bounds = array<i64: 1, 1, 32>}]} {
    %c0 = arith.constant 0 : index
    %c0_0 = arith.constant 0 : index
    %c0_1 = arith.constant 0 : index
    %0 = vector.load %arg3[%c0, %c0_0, %c0_1] : memref<1x32x128xf32, #tpu.memory_space<vmem>>, vector<1x32x128xf32>
    %1 = vector.shape_cast %0 : vector<1x32x128xf32> to vector<32x128xf32>
    %c0_2 = arith.constant 0 : index
    %c0_3 = arith.constant 0 : index
    %c0_4 = arith.constant 0 : index
    %2 = vector.load %arg4[%c0_2, %c0_3, %c0_4] : memref<1x1x128xf32, #tpu.memory_space<vmem>>, vector<1x1x128xf32>
    %3 = vector.shape_cast %2 : vector<1x1x128xf32> to vector<1x128xf32>
    %c0_5 = arith.constant 0 : index
    %c0_6 = arith.constant 0 : index
    %c0_7 = arith.constant 0 : index
    %4 = vector.load %arg1[%c0_5, %c0_6, %c0_7] : memref<1x8x16xf32, #tpu.memory_space<vmem>>, vector<1x8x16xf32>
    %5 = vector.shape_cast %4 : vector<1x8x16xf32> to vector<8x16xf32>
    %c0_8 = arith.constant 0 : index
    %c0_9 = arith.constant 0 : index
    %c0_10 = arith.constant 0 : index
    %6 = vector.load %arg2[%c0_8, %c0_9, %c0_10] : memref<1x16x128xf32, #tpu.memory_space<vmem>>, vector<1x16x128xf32>
    %7 = vector.shape_cast %6 : vector<1x16x128xf32> to vector<16x128xf32>
    %cst = arith.constant dense<0.000000e+00> : vector<8x128xf32>
    %8 = tpu.matmul %5, %7, %cst {dimension_numbers = #tpu.dot_dimension_numbers<[1], [0], [0], [1], [0, 0, 1, 1], [], []>} : vector<8x16xf32>, vector<16x128xf32>, vector<8x128xf32> -> vector<8x128xf32>
    %9 = vector.broadcast %3 : vector<1x128xf32> to vector<8x128xf32>
    %10 = arith.addf %8, %9 : vector<8x128xf32>
    %c0_11 = arith.constant 0 : index
    %c0_12 = arith.constant 0 : index
    %11 = vector.load %arg8[%c0_11, %c0_12] : memref<8x128xf32, #tpu.memory_space<vmem>>, vector<8x128xf32>
    tpu.vector_store %arg8[%c0_11, %c0_12], %10 {strides = array<i32>} : memref<8x128xf32, #tpu.memory_space<vmem>>, vector<8x128xf32>,
    %cst_13 = arith.constant 0.000000e+00 : f32
    %12 = vector.broadcast %cst_13 : f32 to vector<1x32xf32>
    %cst_14 = arith.constant 0.000000e+00 : f32
    %13 = vector.broadcast %cst_14 : f32 to vector<1x32xf32>
    %c0_i32 = arith.constant 0 : i32
    %c8_i32 = arith.constant 8 : i32
    %14 = arith.muli %c0_i32, %c8_i32 : i32
    %15 = tpu.assume_multiple %14, 8 : i32
    %c0_i32_15 = arith.constant 0 : i32
    %16 = arith.addi %15, %c0_i32_15 : i32
    %17 = arith.index_cast %16 : i32 to index
    %c0_16 = arith.constant 0 : index
    %18 = vector.load %arg8[%17, %c0_16] : memref<8x128xf32, #tpu.memory_space<vmem>>, vector<1x128xf32>
    %cst_17 = arith.constant dense<0.000000e+00> : vector<1x128xf32>
    %19 = tpu.matmul %12, %1, %cst_17 {dimension_numbers = #tpu.dot_dimension_numbers<[1], [0], [0], [1], [0, 0, 1, 1], [], []>} : vector<1x32xf32>, vector<32x128xf32>, vector<1x128xf32> -> vector<1x128xf32>
    %20 = arith.addf %18, %19 : vector<1x128xf32>
    %21 = vector.extract_strided_slice %20 {offsets = [0, 0], sizes = [1, 32], strides = [1, 1]} : vector<1x128xf32> to vector<1x32xf32>
    %22 = arith.negf %21 : vector<1x32xf32>
    %23 = math.exp %22 : vector<1x32xf32>
    %cst_18 = arith.constant 1.000000e+00 : f32
    %24 = vector.broadcast %cst_18 : f32 to vector<1x32xf32>
    %25 = arith.addf %24, %23 : vector<1x32xf32>
    %26 = arith.divf %24, %25 : vector<1x32xf32>
    %27 = vector.extract_strided_slice %20 {offsets = [0, 32], sizes = [1, 32], strides = [1, 1]} : vector<1x128xf32> to vector<1x32xf32>
    %28 = arith.negf %27 : vector<1x32xf32>
    %29 = math.exp %28 : vector<1x32xf32>
    %cst_19 = arith.constant 1.000000e+00 : f32
    %30 = vector.broadcast %cst_19 : f32 to vector<1x32xf32>
    %31 = arith.addf %30, %29 : vector<1x32xf32>
    %32 = arith.divf %30, %31 : vector<1x32xf32>
    %33 = vector.extract_strided_slice %20 {offsets = [0, 64], sizes = [1, 32], strides = [1, 1]} : vector<1x128xf32> to vector<1x32xf32>
    %34 = math.tanh %33 : vector<1x32xf32>
    %35 = vector.extract_strided_slice %20 {offsets = [0, 96], sizes = [1, 32], strides = [1, 1]} : vector<1x128xf32> to vector<1x32xf32>
    %36 = arith.negf %35 : vector<1x32xf32>
    %37 = math.exp %36 : vector<1x32xf32>
    %cst_20 = arith.constant 1.000000e+00 : f32
    %38 = vector.broadcast %cst_20 : f32 to vector<1x32xf32>
    %39 = arith.addf %38, %37 : vector<1x32xf32>
    %40 = arith.divf %38, %39 : vector<1x32xf32>
    %41 = arith.mulf %32, %13 : vector<1x32xf32>
    %42 = arith.mulf %26, %34 : vector<1x32xf32>
    %43 = arith.addf %41, %42 : vector<1x32xf32>
    %44 = math.tanh %43 : vector<1x32xf32>
    %45 = arith.mulf %40, %44 : vector<1x32xf32>
    %c1_i32 = arith.constant 1 : i32
    %46 = arith.addi %15, %c1_i32 : i32
    %47 = arith.index_cast %46 : i32 to index
    %c0_21 = arith.constant 0 : index
    %48 = vector.load %arg8[%47, %c0_21] : memref<8x128xf32, #tpu.memory_space<vmem>>, vector<1x128xf32>
    %cst_22 = arith.constant dense<0.000000e+00> : vector<1x128xf32>
    %49 = tpu.matmul %45, %1, %cst_22 {dimension_numbers = #tpu.dot_dimension_numbers<[1], [0], [0], [1], [0, 0, 1, 1], [], []>} : vector<1x32xf32>, vector<32x128xf32>, vector<1x128xf32> -> vector<1x128xf32>
    %50 = arith.addf %48, %49 : vector<1x128xf32>
    %51 = vector.extract_strided_slice %50 {offsets = [0, 0], sizes = [1, 32], strides = [1, 1]} : vector<1x128xf32> to vector<1x32xf32>
    %52 = arith.negf %51 : vector<1x32xf32>
    %53 = math.exp %52 : vector<1x32xf32>
    %cst_23 = arith.constant 1.000000e+00 : f32
    %54 = vector.broadcast %cst_23 : f32 to vector<1x32xf32>
    %55 = arith.addf %54, %53 : vector<1x32xf32>
    %56 = arith.divf %54, %55 : vector<1x32xf32>
    %57 = vector.extract_strided_slice %50 {offsets = [0, 32], sizes = [1, 32], strides = [1, 1]} : vector<1x128xf32> to vector<1x32xf32>
    %58 = arith.negf %57 : vector<1x32xf32>
    %59 = math.exp %58 : vector<1x32xf32>
    %cst_24 = arith.constant 1.000000e+00 : f32
    %60 = vector.broadcast %cst_24 : f32 to vector<1x32xf32>
    %61 = arith.addf %60, %59 : vector<1x32xf32>
    %62 = arith.divf %60, %61 : vector<1x32xf32>
    %63 = vector.extract_strided_slice %50 {offsets = [0, 64], sizes = [1, 32], strides = [1, 1]} : vector<1x128xf32> to vector<1x32xf32>
    %64 = math.tanh %63 : vector<1x32xf32>
    %65 = vector.extract_strided_slice %50 {offsets = [0, 96], sizes = [1, 32], strides = [1, 1]} : vector<1x128xf32> to vector<1x32xf32>
    %66 = arith.negf %65 : vector<1x32xf32>
    %67 = math.exp %66 : vector<1x32xf32>
    %cst_25 = arith.constant 1.000000e+00 : f32
    %68 = vector.broadcast %cst_25 : f32 to vector<1x32xf32>
    %69 = arith.addf %68, %67 : vector<1x32xf32>
    %70 = arith.divf %68, %69 : vector<1x32xf32>
    %71 = arith.mulf %62, %43 : vector<1x32xf32>
    %72 = arith.mulf %56, %64 : vector<1x32xf32>
    %73 = arith.addf %71, %72 : vector<1x32xf32>
    %74 = math.tanh %73 : vector<1x32xf32>
    %75 = arith.mulf %70, %74 : vector<1x32xf32>
    %c2_i32 = arith.constant 2 : i32
    %76 = arith.addi %15, %c2_i32 : i32
    %77 = arith.index_cast %76 : i32 to index
    %c0_26 = arith.constant 0 : index
    %78 = vector.load %arg8[%77, %c0_26] : memref<8x128xf32, #tpu.memory_space<vmem>>, vector<1x128xf32>
    %cst_27 = arith.constant dense<0.000000e+00> : vector<1x128xf32>
    %79 = tpu.matmul %75, %1, %cst_27 {dimension_numbers = #tpu.dot_dimension_numbers<[1], [0], [0], [1], [0, 0, 1, 1], [], []>} : vector<1x32xf32>, vector<32x128xf32>, vector<1x128xf32> -> vector<1x128xf32>
    %80 = arith.addf %78, %79 : vector<1x128xf32>
    %81 = vector.extract_strided_slice %80 {offsets = [0, 0], sizes = [1, 32], strides = [1, 1]} : vector<1x128xf32> to vector<1x32xf32>
    %82 = arith.negf %81 : vector<1x32xf32>
    %83 = math.exp %82 : vector<1x32xf32>
    %cst_28 = arith.constant 1.000000e+00 : f32
    %84 = vector.broadcast %cst_28 : f32 to vector<1x32xf32>
    %85 = arith.addf %84, %83 : vector<1x32xf32>
    %86 = arith.divf %84, %85 : vector<1x32xf32>
    %87 = vector.extract_strided_slice %80 {offsets = [0, 32], sizes = [1, 32], strides = [1, 1]} : vector<1x128xf32> to vector<1x32xf32>
    %88 = arith.negf %87 : vector<1x32xf32>
    %89 = math.exp %88 : vector<1x32xf32>
    %cst_29 = arith.constant 1.000000e+00 : f32
    %90 = vector.broadcast %cst_29 : f32 to vector<1x32xf32>
    %91 = arith.addf %90, %89 : vector<1x32xf32>
    %92 = arith.divf %90, %91 : vector<1x32xf32>
    %93 = vector.extract_strided_slice %80 {offsets = [0, 64], sizes = [1, 32], strides = [1, 1]} : vector<1x128xf32> to vector<1x32xf32>
    %94 = math.tanh %93 : vector<1x32xf32>
    %95 = vector.extract_strided_slice %80 {offsets = [0, 96], sizes = [1, 32], strides = [1, 1]} : vector<1x128xf32> to vector<1x32xf32>
    %96 = arith.negf %95 : vector<1x32xf32>
    %97 = math.exp %96 : vector<1x32xf32>
    %cst_30 = arith.constant 1.000000e+00 : f32
    %98 = vector.broadcast %cst_30 : f32 to vector<1x32xf32>
    %99 = arith.addf %98, %97 : vector<1x32xf32>
    %100 = arith.divf %98, %99 : vector<1x32xf32>
    %101 = arith.mulf %92, %73 : vector<1x32xf32>
    %102 = arith.mulf %86, %94 : vector<1x32xf32>
    %103 = arith.addf %101, %102 : vector<1x32xf32>
    %104 = math.tanh %103 : vector<1x32xf32>
    %105 = arith.mulf %100, %104 : vector<1x32xf32>
    %c3_i32 = arith.constant 3 : i32
    %106 = arith.addi %15, %c3_i32 : i32
    %107 = arith.index_cast %106 : i32 to index
    %c0_31 = arith.constant 0 : index
    %108 = vector.load %arg8[%107, %c0_31] : memref<8x128xf32, #tpu.memory_space<vmem>>, vector<1x128xf32>
    %cst_32 = arith.constant dense<0.000000e+00> : vector<1x128xf32>
    %109 = tpu.matmul %105, %1, %cst_32 {dimension_numbers = #tpu.dot_dimension_numbers<[1], [0], [0], [1], [0, 0, 1, 1], [], []>} : vector<1x32xf32>, vector<32x128xf32>, vector<1x128xf32> -> vector<1x128xf32>
    %110 = arith.addf %108, %109 : vector<1x128xf32>
    %111 = vector.extract_strided_slice %110 {offsets = [0, 0], sizes = [1, 32], strides = [1, 1]} : vector<1x128xf32> to vector<1x32xf32>
    %112 = arith.negf %111 : vector<1x32xf32>
    %113 = math.exp %112 : vector<1x32xf32>
    %cst_33 = arith.constant 1.000000e+00 : f32
    %114 = vector.broadcast %cst_33 : f32 to vector<1x32xf32>
    %115 = arith.addf %114, %113 : vector<1x32xf32>
    %116 = arith.divf %114, %115 : vector<1x32xf32>
    %117 = vector.extract_strided_slice %110 {offsets = [0, 32], sizes = [1, 32], strides = [1, 1]} : vector<1x128xf32> to vector<1x32xf32>
    %118 = arith.negf %117 : vector<1x32xf32>
    %119 = math.exp %118 : vector<1x32xf32>
    %cst_34 = arith.constant 1.000000e+00 : f32
    %120 = vector.broadcast %cst_34 : f32 to vector<1x32xf32>
    %121 = arith.addf %120, %119 : vector<1x32xf32>
    %122 = arith.divf %120, %121 : vector<1x32xf32>
    %123 = vector.extract_strided_slice %110 {offsets = [0, 64], sizes = [1, 32], strides = [1, 1]} : vector<1x128xf32> to vector<1x32xf32>
    %124 = math.tanh %123 : vector<1x32xf32>
    %125 = vector.extract_strided_slice %110 {offsets = [0, 96], sizes = [1, 32], strides = [1, 1]} : vector<1x128xf32> to vector<1x32xf32>
    %126 = arith.negf %125 : vector<1x32xf32>
    %127 = math.exp %126 : vector<1x32xf32>
    %cst_35 = arith.constant 1.000000e+00 : f32
    %128 = vector.broadcast %cst_35 : f32 to vector<1x32xf32>
    %129 = arith.addf %128, %127 : vector<1x32xf32>
    %130 = arith.divf %128, %129 : vector<1x32xf32>
    %131 = arith.mulf %122, %103 : vector<1x32xf32>
    %132 = arith.mulf %116, %124 : vector<1x32xf32>
    %133 = arith.addf %131, %132 : vector<1x32xf32>
    %134 = math.tanh %133 : vector<1x32xf32>
    %135 = arith.mulf %130, %134 : vector<1x32xf32>
    %c4_i32 = arith.constant 4 : i32
    %136 = arith.addi %15, %c4_i32 : i32
    %137 = arith.index_cast %136 : i32 to index
    %c0_36 = arith.constant 0 : index
    %138 = vector.load %arg8[%137, %c0_36] : memref<8x128xf32, #tpu.memory_space<vmem>>, vector<1x128xf32>
    %cst_37 = arith.constant dense<0.000000e+00> : vector<1x128xf32>
    %139 = tpu.matmul %135, %1, %cst_37 {dimension_numbers = #tpu.dot_dimension_numbers<[1], [0], [0], [1], [0, 0, 1, 1], [], []>} : vector<1x32xf32>, vector<32x128xf32>, vector<1x128xf32> -> vector<1x128xf32>
    %140 = arith.addf %138, %139 : vector<1x128xf32>
    %141 = vector.extract_strided_slice %140 {offsets = [0, 0], sizes = [1, 32], strides = [1, 1]} : vector<1x128xf32> to vector<1x32xf32>
    %142 = arith.negf %141 : vector<1x32xf32>
    %143 = math.exp %142 : vector<1x32xf32>
    %cst_38 = arith.constant 1.000000e+00 : f32
    %144 = vector.broadcast %cst_38 : f32 to vector<1x32xf32>
    %145 = arith.addf %144, %143 : vector<1x32xf32>
    %146 = arith.divf %144, %145 : vector<1x32xf32>
    %147 = vector.extract_strided_slice %140 {offsets = [0, 32], sizes = [1, 32], strides = [1, 1]} : vector<1x128xf32> to vector<1x32xf32>
    %148 = arith.negf %147 : vector<1x32xf32>
    %149 = math.exp %148 : vector<1x32xf32>
    %cst_39 = arith.constant 1.000000e+00 : f32
    %150 = vector.broadcast %cst_39 : f32 to vector<1x32xf32>
    %151 = arith.addf %150, %149 : vector<1x32xf32>
    %152 = arith.divf %150, %151 : vector<1x32xf32>
    %153 = vector.extract_strided_slice %140 {offsets = [0, 64], sizes = [1, 32], strides = [1, 1]} : vector<1x128xf32> to vector<1x32xf32>
    %154 = math.tanh %153 : vector<1x32xf32>
    %155 = vector.extract_strided_slice %140 {offsets = [0, 96], sizes = [1, 32], strides = [1, 1]} : vector<1x128xf32> to vector<1x32xf32>
    %156 = arith.negf %155 : vector<1x32xf32>
    %157 = math.exp %156 : vector<1x32xf32>
    %cst_40 = arith.constant 1.000000e+00 : f32
    %158 = vector.broadcast %cst_40 : f32 to vector<1x32xf32>
    %159 = arith.addf %158, %157 : vector<1x32xf32>
    %160 = arith.divf %158, %159 : vector<1x32xf32>
    %161 = arith.mulf %152, %133 : vector<1x32xf32>
    %162 = arith.mulf %146, %154 : vector<1x32xf32>
    %163 = arith.addf %161, %162 : vector<1x32xf32>
    %164 = math.tanh %163 : vector<1x32xf32>
    %165 = arith.mulf %160, %164 : vector<1x32xf32>
    %c5_i32 = arith.constant 5 : i32
    %166 = arith.addi %15, %c5_i32 : i32
    %167 = arith.index_cast %166 : i32 to index
    %c0_41 = arith.constant 0 : index
    %168 = vector.load %arg8[%167, %c0_41] : memref<8x128xf32, #tpu.memory_space<vmem>>, vector<1x128xf32>
    %cst_42 = arith.constant dense<0.000000e+00> : vector<1x128xf32>
    %169 = tpu.matmul %165, %1, %cst_42 {dimension_numbers = #tpu.dot_dimension_numbers<[1], [0], [0], [1], [0, 0, 1, 1], [], []>} : vector<1x32xf32>, vector<32x128xf32>, vector<1x128xf32> -> vector<1x128xf32>
    %170 = arith.addf %168, %169 : vector<1x128xf32>
    %171 = vector.extract_strided_slice %170 {offsets = [0, 0], sizes = [1, 32], strides = [1, 1]} : vector<1x128xf32> to vector<1x32xf32>
    %172 = arith.negf %171 : vector<1x32xf32>
    %173 = math.exp %172 : vector<1x32xf32>
    %cst_43 = arith.constant 1.000000e+00 : f32
    %174 = vector.broadcast %cst_43 : f32 to vector<1x32xf32>
    %175 = arith.addf %174, %173 : vector<1x32xf32>
    %176 = arith.divf %174, %175 : vector<1x32xf32>
    %177 = vector.extract_strided_slice %170 {offsets = [0, 32], sizes = [1, 32], strides = [1, 1]} : vector<1x128xf32> to vector<1x32xf32>
    %178 = arith.negf %177 : vector<1x32xf32>
    %179 = math.exp %178 : vector<1x32xf32>
    %cst_44 = arith.constant 1.000000e+00 : f32
    %180 = vector.broadcast %cst_44 : f32 to vector<1x32xf32>
    %181 = arith.addf %180, %179 : vector<1x32xf32>
    %182 = arith.divf %180, %181 : vector<1x32xf32>
    %183 = vector.extract_strided_slice %170 {offsets = [0, 64], sizes = [1, 32], strides = [1, 1]} : vector<1x128xf32> to vector<1x32xf32>
    %184 = math.tanh %183 : vector<1x32xf32>
    %185 = vector.extract_strided_slice %170 {offsets = [0, 96], sizes = [1, 32], strides = [1, 1]} : vector<1x128xf32> to vector<1x32xf32>
    %186 = arith.negf %185 : vector<1x32xf32>
    %187 = math.exp %186 : vector<1x32xf32>
    %cst_45 = arith.constant 1.000000e+00 : f32
    %188 = vector.broadcast %cst_45 : f32 to vector<1x32xf32>
    %189 = arith.addf %188, %187 : vector<1x32xf32>
    %190 = arith.divf %188, %189 : vector<1x32xf32>
    %191 = arith.mulf %182, %163 : vector<1x32xf32>
    %192 = arith.mulf %176, %184 : vector<1x32xf32>
    %193 = arith.addf %191, %192 : vector<1x32xf32>
    %194 = math.tanh %193 : vector<1x32xf32>
    %195 = arith.mulf %190, %194 : vector<1x32xf32>
    %c6_i32 = arith.constant 6 : i32
    %196 = arith.addi %15, %c6_i32 : i32
    %197 = arith.index_cast %196 : i32 to index
    %c0_46 = arith.constant 0 : index
    %198 = vector.load %arg8[%197, %c0_46] : memref<8x128xf32, #tpu.memory_space<vmem>>, vector<1x128xf32>
    %cst_47 = arith.constant dense<0.000000e+00> : vector<1x128xf32>
    %199 = tpu.matmul %195, %1, %cst_47 {dimension_numbers = #tpu.dot_dimension_numbers<[1], [0], [0], [1], [0, 0, 1, 1], [], []>} : vector<1x32xf32>, vector<32x128xf32>, vector<1x128xf32> -> vector<1x128xf32>
    %200 = arith.addf %198, %199 : vector<1x128xf32>
    %201 = vector.extract_strided_slice %200 {offsets = [0, 0], sizes = [1, 32], strides = [1, 1]} : vector<1x128xf32> to vector<1x32xf32>
    %202 = arith.negf %201 : vector<1x32xf32>
    %203 = math.exp %202 : vector<1x32xf32>
    %cst_48 = arith.constant 1.000000e+00 : f32
    %204 = vector.broadcast %cst_48 : f32 to vector<1x32xf32>
    %205 = arith.addf %204, %203 : vector<1x32xf32>
    %206 = arith.divf %204, %205 : vector<1x32xf32>
    %207 = vector.extract_strided_slice %200 {offsets = [0, 32], sizes = [1, 32], strides = [1, 1]} : vector<1x128xf32> to vector<1x32xf32>
    %208 = arith.negf %207 : vector<1x32xf32>
    %209 = math.exp %208 : vector<1x32xf32>
    %cst_49 = arith.constant 1.000000e+00 : f32
    %210 = vector.broadcast %cst_49 : f32 to vector<1x32xf32>
    %211 = arith.addf %210, %209 : vector<1x32xf32>
    %212 = arith.divf %210, %211 : vector<1x32xf32>
    %213 = vector.extract_strided_slice %200 {offsets = [0, 64], sizes = [1, 32], strides = [1, 1]} : vector<1x128xf32> to vector<1x32xf32>
    %214 = math.tanh %213 : vector<1x32xf32>
    %215 = vector.extract_strided_slice %200 {offsets = [0, 96], sizes = [1, 32], strides = [1, 1]} : vector<1x128xf32> to vector<1x32xf32>
    %216 = arith.negf %215 : vector<1x32xf32>
    %217 = math.exp %216 : vector<1x32xf32>
    %cst_50 = arith.constant 1.000000e+00 : f32
    %218 = vector.broadcast %cst_50 : f32 to vector<1x32xf32>
    %219 = arith.addf %218, %217 : vector<1x32xf32>
    %220 = arith.divf %218, %219 : vector<1x32xf32>
    %221 = arith.mulf %212, %193 : vector<1x32xf32>
    %222 = arith.mulf %206, %214 : vector<1x32xf32>
    %223 = arith.addf %221, %222 : vector<1x32xf32>
    %224 = math.tanh %223 : vector<1x32xf32>
    %225 = arith.mulf %220, %224 : vector<1x32xf32>
    %c7_i32 = arith.constant 7 : i32
    %226 = arith.addi %15, %c7_i32 : i32
    %227 = arith.index_cast %226 : i32 to index
    %c0_51 = arith.constant 0 : index
    %228 = vector.load %arg8[%227, %c0_51] : memref<8x128xf32, #tpu.memory_space<vmem>>, vector<1x128xf32>
    %cst_52 = arith.constant dense<0.000000e+00> : vector<1x128xf32>
    %229 = tpu.matmul %225, %1, %cst_52 {dimension_numbers = #tpu.dot_dimension_numbers<[1], [0], [0], [1], [0, 0, 1, 1], [], []>} : vector<1x32xf32>, vector<32x128xf32>, vector<1x128xf32> -> vector<1x128xf32>
    %230 = arith.addf %228, %229 : vector<1x128xf32>
    %231 = vector.extract_strided_slice %230 {offsets = [0, 0], sizes = [1, 32], strides = [1, 1]} : vector<1x128xf32> to vector<1x32xf32>
    %232 = arith.negf %231 : vector<1x32xf32>
    %233 = math.exp %232 : vector<1x32xf32>
    %cst_53 = arith.constant 1.000000e+00 : f32
    %234 = vector.broadcast %cst_53 : f32 to vector<1x32xf32>
    %235 = arith.addf %234, %233 : vector<1x32xf32>
    %236 = arith.divf %234, %235 : vector<1x32xf32>
    %237 = vector.extract_strided_slice %230 {offsets = [0, 32], sizes = [1, 32], strides = [1, 1]} : vector<1x128xf32> to vector<1x32xf32>
    %238 = arith.negf %237 : vector<1x32xf32>
    %239 = math.exp %238 : vector<1x32xf32>
    %cst_54 = arith.constant 1.000000e+00 : f32
    %240 = vector.broadcast %cst_54 : f32 to vector<1x32xf32>
    %241 = arith.addf %240, %239 : vector<1x32xf32>
    %242 = arith.divf %240, %241 : vector<1x32xf32>
    %243 = vector.extract_strided_slice %230 {offsets = [0, 64], sizes = [1, 32], strides = [1, 1]} : vector<1x128xf32> to vector<1x32xf32>
    %244 = math.tanh %243 : vector<1x32xf32>
    %245 = vector.extract_strided_slice %230 {offsets = [0, 96], sizes = [1, 32], strides = [1, 1]} : vector<1x128xf32> to vector<1x32xf32>
    %246 = arith.negf %245 : vector<1x32xf32>
    %247 = math.exp %246 : vector<1x32xf32>
    %cst_55 = arith.constant 1.000000e+00 : f32
    %248 = vector.broadcast %cst_55 : f32 to vector<1x32xf32>
    %249 = arith.addf %248, %247 : vector<1x32xf32>
    %250 = arith.divf %248, %249 : vector<1x32xf32>
    %251 = arith.mulf %242, %223 : vector<1x32xf32>
    %252 = arith.mulf %236, %244 : vector<1x32xf32>
    %253 = arith.addf %251, %252 : vector<1x32xf32>
    %254 = math.tanh %253 : vector<1x32xf32>
    %255 = arith.mulf %250, %254 : vector<1x32xf32>
    %256 = tpu.concatenate %45, %75, %105, %135, %165, %195, %225, %255 in 0 : vector<1x32xf32>, vector<1x32xf32>, vector<1x32xf32>, vector<1x32xf32>, vector<1x32xf32>, vector<1x32xf32>, vector<1x32xf32>, vector<1x32xf32> -> vector<8x32xf32>
    %c0_56 = arith.constant 0 : index
    %257 = arith.index_cast %15 : i32 to index
    %c0_57 = arith.constant 0 : index
    %258 = vector.load %arg5[%c0_56, %257, %c0_57] : memref<1x8x32xf32, #tpu.memory_space<vmem>>, vector<1x8x32xf32>
    %259 = vector.shape_cast %258 : vector<1x8x32xf32> to vector<8x32xf32>
    %260 = vector.shape_cast %256 : vector<8x32xf32> to vector<1x8x32xf32>
    tpu.vector_store %arg5[%c0_56, %257, %c0_57], %260 {strides = array<i32>} : memref<1x8x32xf32, #tpu.memory_space<vmem>>, vector<1x8x32xf32>,
    %c1_i32_58 = arith.constant 1 : i32
    %c0_59 = arith.constant 0 : index
    %c0_60 = arith.constant 0 : index
    %c0_61 = arith.constant 0 : index
    %261 = vector.load %arg6[%c0_59, %c0_60, %c0_61] : memref<1x1x32xf32, #tpu.memory_space<vmem>>, vector<1x1x32xf32>
    %262 = vector.shape_cast %261 : vector<1x1x32xf32> to vector<1x32xf32>
    %263 = vector.shape_cast %255 : vector<1x32xf32> to vector<1x1x32xf32>
    tpu.vector_store %arg6[%c0_59, %c0_60, %c0_61], %263 {strides = array<i32>} : memref<1x1x32xf32, #tpu.memory_space<vmem>>, vector<1x1x32xf32>,
    %c0_62 = arith.constant 0 : index
    %c0_63 = arith.constant 0 : index
    %c0_64 = arith.constant 0 : index
    %264 = vector.load %arg7[%c0_62, %c0_63, %c0_64] : memref<1x1x32xf32, #tpu.memory_space<vmem>>, vector<1x1x32xf32>
    %265 = vector.shape_cast %264 : vector<1x1x32xf32> to vector<1x32xf32>
    %266 = vector.shape_cast %253 : vector<1x32xf32> to vector<1x1x32xf32>
    tpu.vector_store %arg7[%c0_62, %c0_63, %c0_64], %266 {strides = array<i32>} : memref<1x1x32xf32, #tpu.memory_space<vmem>>, vector<1x1x32xf32>,
    return
  }
  func.func @transform_0(%arg0: i32) -> (i32, i32, i32) {
    %c0_i32 = arith.constant 0 : i32
    %c0_i32_0 = arith.constant 0 : i32
    %c0_i32_1 = arith.constant 0 : i32
    return %arg0, %c0_i32, %c0_i32_0 : i32, i32, i32
  }
  func.func @transform_1(%arg0: i32) -> (i32, i32, i32) {
    %c0_i32 = arith.constant 0 : i32
    %c0_i32_0 = arith.constant 0 : i32
    %c0_i32_1 = arith.constant 0 : i32
    return %arg0, %c0_i32, %c0_i32_0 : i32, i32, i32
  }
  func.func @transform_2(%arg0: i32) -> (i32, i32, i32) {
    %c0_i32 = arith.constant 0 : i32
    %c0_i32_0 = arith.constant 0 : i32
    %c0_i32_1 = arith.constant 0 : i32
    return %arg0, %c0_i32, %c0_i32_0 : i32, i32, i32
  }
  func.func @transform_3(%arg0: i32) -> (i32, i32, i32) {
    %c0_i32 = arith.constant 0 : i32
    %c0_i32_0 = arith.constant 0 : i32
    %c0_i32_1 = arith.constant 0 : i32
    return %arg0, %c0_i32, %c0_i32_0 : i32, i32, i32
  }
  func.func @transform_4(%arg0: i32) -> (i32, i32, i32) {
    %c0_i32 = arith.constant 0 : i32
    %c0_i32_0 = arith.constant 0 : i32
    %c0_i32_1 = arith.constant 0 : i32
    return %arg0, %c0_i32, %c0_i32_0 : i32, i32, i32
  }
  func.func @transform_5(%arg0: i32) -> (i32, i32, i32) {
    %c0_i32 = arith.constant 0 : i32
    %c0_i32_0 = arith.constant 0 : i32
    %c0_i32_1 = arith.constant 0 : i32
    return %arg0, %c0_i32, %c0_i32_0 : i32, i32, i32
  }
  func.func @transform_6(%arg0: i32) -> (i32, i32, i32) {
    %c0_i32 = arith.constant 0 : i32
    %c0_i32_0 = arith.constant 0 : i32
    %c0_i32_1 = arith.constant 0 : i32
    return %arg0, %c0_i32, %c0_i32_0 : i32, i32, i32
  }
}

</mosaic_0001>

<llo_original>
// kernel: tpu_custom_call.1
$region0: #{tpu_custom_call.1}
  #allocation0 [shape = 'u32[]', space=smem, size = 0x4, offset = 0x4, fixed_abs, tag = 'smem constant byte address 0x4 - core index']
  #allocation1 [shape = 'u32[72,128]{1,0:T(1,128)}', space=vmem, size = 0x9000, scoped, tag = 'internal scratch']
  #allocation2 [shape = 'f32[8,128]{1,0:T(8,128)}', space=vmem, size = 0x1000, scoped, tag = 'scratch operand']
  %s0 = inlined_call_operand.hbm [shape: f32[2,8,16], index: 0, kind: input, shape index: {}]
  %s1 = inlined_call_operand.hbm [shape: f32[2,16,128], index: 1, kind: input, shape index: {}]
  %s2 = inlined_call_operand.hbm [shape: f32[2,32,128], index: 2, kind: input, shape index: {}]
  %s3 = inlined_call_operand.vmem [shape: f32[2,1,128], index: 3, kind: input, shape index: {}]
  %s4 = inlined_call_operand.hbm [shape: f32[2,8,32], index: 4, kind: output, shape index: {0}]
  %s5 = inlined_call_operand.hbm [shape: f32[2,1,32], index: 5, kind: output, shape index: {1}]
  %s6 = inlined_call_operand.hbm [shape: f32[2,1,32], index: 6, kind: output, shape index: {2}]
  %7 = xla_tuple %s4, %s5, %s6
  %s8 = sld [smem:[#allocation0]]
  $region77: #{tpu_custom_call.1} parent=0
    _
  %s10 = ssub.s32 1, %s8
  %s11 = scalar_select 0, %s10, %s8
  $region1: #{tpu_custom_call.1} parent=0
    #allocation3 [shape = 'u8[8192]{0}', space=vmem, size = 0x2000, scoped, tag = 'input window, operand 0']
    #allocation4 [shape = 's32[2]{0}', space=sflag, size = 0x8, scoped, tag = 'scoped memory for tpu_custom_call.1']
    #allocation5 [shape = 's32[2]{0}', space=sflag, size = 0x8, scoped, tag = 'scoped memory for tpu_custom_call.1']
    #allocation6 [shape = 'u8[16384]{0}', space=vmem, size = 0x4000, scoped, tag = 'input window, operand 1']
    #allocation7 [shape = 's32[2]{0}', space=sflag, size = 0x8, scoped, tag = 'scoped memory for tpu_custom_call.1']
    #allocation8 [shape = 'u8[32768]{0}', space=vmem, size = 0x8000, scoped, tag = 'input window, operand 2']
    #allocation9 [shape = 'u8[8192]{0}', space=vmem, size = 0x2000, scoped, tag = 'output window, operand 0']
    #allocation10 [shape = 'u8[1024]{0}', space=vmem, size = 0x400, scoped, tag = 'output window, operand 1']
    #allocation11 [shape = 's32[2]{0}', space=sflag, size = 0x8, scoped, tag = 'scoped memory for tpu_custom_call.1']
    #allocation12 [shape = 'u8[1024]{0}', space=vmem, size = 0x400, scoped, tag = 'output window, operand 2']
    %12 = vsyncpa [#allocation4], 0
    %s13 = scalar_lea.sflag [#allocation4], 1
    %14 = vsyncpa %s13, 0
    %15 = vsyncpa [#allocation7], 0
    %s16 = scalar_lea.sflag [#allocation7], 1
    %17 = vsyncpa %s16, 0
    %18 = vsyncpa [#allocation5], 0
    %s19 = scalar_lea.sflag [#allocation5], 1
    %20 = vsyncpa %s19, 0
    %21 = vsyncpa [#allocation11], 0
    %s22 = scalar_lea.sflag [#allocation11], 1
    %23 = vsyncpa %s22, 0
    loop: start=0, step=1, limit=4
    $region2: #{tpu_custom_call.1} parent=1 // loop_pre_header
      _
    $region3: #{tpu_custom_call.1} parent=1 // loop_header
      %s25 = sphi 0, %s29
      %p26 = scmp.ge.s32.totalorder %s25, 4
      %s35 = sphi 0, %s37
      %s38 = sphi 0, %s35
      %s39 = sphi 0, %s38
      %s55 = sphi 0, %s39
      %s61 = sphi 0, %s63
      %s64 = sphi 0, %s61
      %s65 = sphi 0, %s64
      %s81 = sphi 0, %s65
      %s87 = sphi 0, %s89
      %s90 = sphi 0, %s87
      %s91 = sphi 0, %s90
      %s107 = sphi 0, %s91
      %s113 = sphi 0, %s115
      %s116 = sphi 0, %s113
      %s117 = sphi 0, %s116
      %s133 = sphi 0, %s117
      %s139 = sphi 0, %s141
      %s142 = sphi 0, %s139
      %s143 = sphi 0, %s142
      %s159 = sphi 0, %s143
      %s165 = sphi 0, %s167
      %s168 = sphi 0, %s165
      %s169 = sphi 0, %s168
      %s185 = sphi 0, %s169
      %s191 = sphi 0, %s193
      %s194 = sphi 0, %s191
      %s195 = sphi 0, %s194
      %s211 = sphi 0, %s195
    $region4: #{tpu_custom_call.1} parent=1 // loop_header_branch
      %28 = sbr.rel (%p26) target = $region8
    $region5: #{tpu_custom_call.1} parent=1 // loop_body
      %s30 = ssub.s32 %s25, 1
      %s31 = ssub.s32 %s25, 2
      %s32 = sadd.s32 %s25, 1
      %s33 = ssub.s32 %s25, %s32
      %p34 = scmp.eq.s32.totalorder %s33, 0
      %s36 = sadd.s32 %s35, 1
      %s37 = scalar_select %p34, %s35, %s36
      %p40 = pneg %p34
      %p41 = scmp.eq.s32.totalorder %s25, 1
      %p42 = por %p40, %p41
      %p43 = scmp.ne.s32.totalorder %s35, %s38
      %p44 = scmp.eq.s32.totalorder %s25, 0
      %p45 = por %p43, %p44
      %p46 = scmp.ne.s32.totalorder %s35, %s38
      %p47 = scmp.eq.s32.totalorder %s30, 1
      %p48 = por %p46, %p47
      %p49 = scmp.ne.s32.totalorder %s38, %s39
      %p50 = scmp.eq.s32.totalorder %s30, 0
      %p51 = por %p49, %p50
      %p52 = scmp.ne.s32.totalorder %s38, %s39
      %p53 = scmp.eq.s32.totalorder %s31, 1
      %p54 = por %p52, %p53
      %p56 = scmp.ne.s32.totalorder %s39, %s55
      %p57 = scmp.eq.s32.totalorder %s31, 0
      %p58 = por %p56, %p57
      %s59 = ssub.s32 %s25, %s32
      %p60 = scmp.eq.s32.totalorder %s59, 0
      %s62 = sadd.s32 %s61, 1
      %s63 = scalar_select %p60, %s61, %s62
      %p66 = pneg %p60
      %p67 = scmp.eq.s32.totalorder %s25, 1
      %p68 = por %p66, %p67
      %p69 = scmp.ne.s32.totalorder %s61, %s64
      %p70 = scmp.eq.s32.totalorder %s25, 0
      %p71 = por %p69, %p70
      %p72 = scmp.ne.s32.totalorder %s61, %s64
      %p73 = scmp.eq.s32.totalorder %s30, 1
      %p74 = por %p72, %p73
      %p75 = scmp.ne.s32.totalorder %s64, %s65
      %p76 = scmp.eq.s32.totalorder %s30, 0
      %p77 = por %p75, %p76
      %p78 = scmp.ne.s32.totalorder %s64, %s65
      %p79 = scmp.eq.s32.totalorder %s31, 1
      %p80 = por %p78, %p79
      %p82 = scmp.ne.s32.totalorder %s65, %s81
      %p83 = scmp.eq.s32.totalorder %s31, 0
      %p84 = por %p82, %p83
      %s85 = ssub.s32 %s25, %s32
      %p86 = scmp.eq.s32.totalorder %s85, 0
      %s88 = sadd.s32 %s87, 1
      %s89 = scalar_select %p86, %s87, %s88
      %p92 = pneg %p86
      %p93 = scmp.eq.s32.totalorder %s25, 1
      %p94 = por %p92, %p93
      %p95 = scmp.ne.s32.totalorder %s87, %s90
      %p96 = scmp.eq.s32.totalorder %s25, 0
      %p97 = por %p95, %p96
      %p98 = scmp.ne.s32.totalorder %s87, %s90
      %p99 = scmp.eq.s32.totalorder %s30, 1
      %p100 = por %p98, %p99
      %p101 = scmp.ne.s32.totalorder %s90, %s91
      %p102 = scmp.eq.s32.totalorder %s30, 0
      %p103 = por %p101, %p102
      %p104 = scmp.ne.s32.totalorder %s90, %s91
      %p105 = scmp.eq.s32.totalorder %s31, 1
      %p106 = por %p104, %p105
      %p108 = scmp.ne.s32.totalorder %s91, %s107
      %p109 = scmp.eq.s32.totalorder %s31, 0
      %p110 = por %p108, %p109
      %s111 = ssub.s32 %s25, %s32
      %p112 = scmp.eq.s32.totalorder %s111, 0
      %s114 = sadd.s32 %s113, 1
      %s115 = scalar_select %p112, %s113, %s114
      %p118 = pneg %p112
      %p119 = scmp.eq.s32.totalorder %s25, 1
      %p120 = por %p118, %p119
      %p121 = scmp.ne.s32.totalorder %s113, %s116
      %p122 = scmp.eq.s32.totalorder %s25, 0
      %p123 = por %p121, %p122
      %p124 = scmp.ne.s32.totalorder %s113, %s116
      %p125 = scmp.eq.s32.totalorder %s30, 1
      %p126 = por %p124, %p125
      %p127 = scmp.ne.s32.totalorder %s116, %s117
      %p128 = scmp.eq.s32.totalorder %s30, 0
      %p129 = por %p127, %p128
      %p130 = scmp.ne.s32.totalorder %s116, %s117
      %p131 = scmp.eq.s32.totalorder %s31, 1
      %p132 = por %p130, %p131
      %p134 = scmp.ne.s32.totalorder %s117, %s133
      %p135 = scmp.eq.s32.totalorder %s31, 0
      %p136 = por %p134, %p135
      %s137 = ssub.s32 %s25, %s32
      %p138 = scmp.eq.s32.totalorder %s137, 0
      %s140 = sadd.s32 %s139, 1
      %s141 = scalar_select %p138, %s139, %s140
      %p144 = pneg %p138
      %p145 = scmp.eq.s32.totalorder %s25, 1
      %p146 = por %p144, %p145
      %p147 = scmp.ne.s32.totalorder %s139, %s142
      %p148 = scmp.eq.s32.totalorder %s25, 0
      %p149 = por %p147, %p148
      %p150 = scmp.ne.s32.totalorder %s139, %s142
      %p151 = scmp.eq.s32.totalorder %s30, 1
      %p152 = por %p150, %p151
      %p153 = scmp.ne.s32.totalorder %s142, %s143
      %p154 = scmp.eq.s32.totalorder %s30, 0
      %p155 = por %p153, %p154
      %p156 = scmp.ne.s32.totalorder %s142, %s143
      %p157 = scmp.eq.s32.totalorder %s31, 1
      %p158 = por %p156, %p157
      %p160 = scmp.ne.s32.totalorder %s143, %s159
      %p161 = scmp.eq.s32.totalorder %s31, 0
      %p162 = por %p160, %p161
      %s163 = ssub.s32 %s25, %s32
      %p164 = scmp.eq.s32.totalorder %s163, 0
      %s166 = sadd.s32 %s165, 1
      %s167 = scalar_select %p164, %s165, %s166
      %p170 = pneg %p164
      %p171 = scmp.eq.s32.totalorder %s25, 1
      %p172 = por %p170, %p171
      %p173 = scmp.ne.s32.totalorder %s165, %s168
      %p174 = scmp.eq.s32.totalorder %s25, 0
      %p175 = por %p173, %p174
      %p176 = scmp.ne.s32.totalorder %s165, %s168
      %p177 = scmp.eq.s32.totalorder %s30, 1
      %p178 = por %p176, %p177
      %p179 = scmp.ne.s32.totalorder %s168, %s169
      %p180 = scmp.eq.s32.totalorder %s30, 0
      %p181 = por %p179, %p180
      %p182 = scmp.ne.s32.totalorder %s168, %s169
      %p183 = scmp.eq.s32.totalorder %s31, 1
      %p184 = por %p182, %p183
      %p186 = scmp.ne.s32.totalorder %s169, %s185
      %p187 = scmp.eq.s32.totalorder %s31, 0
      %p188 = por %p186, %p187
      %s189 = ssub.s32 %s25, %s32
      %p190 = scmp.eq.s32.totalorder %s189, 0
      %s192 = sadd.s32 %s191, 1
      %s193 = scalar_select %p190, %s191, %s192
      %p196 = pneg %p190
      %p197 = scmp.eq.s32.totalorder %s25, 1
      %p198 = por %p196, %p197
      %p199 = scmp.ne.s32.totalorder %s191, %s194
      %p200 = scmp.eq.s32.totalorder %s25, 0
      %p201 = por %p199, %p200
      %p202 = scmp.ne.s32.totalorder %s191, %s194
      %p203 = scmp.eq.s32.totalorder %s30, 1
      %p204 = por %p202, %p203
      %p205 = scmp.ne.s32.totalorder %s194, %s195
      %p206 = scmp.eq.s32.totalorder %s30, 0
      %p207 = por %p205, %p206
      %p208 = scmp.ne.s32.totalorder %s194, %s195
      %p209 = scmp.eq.s32.totalorder %s31, 1
      %p210 = por %p208, %p209
      %p212 = scmp.ne.s32.totalorder %s195, %s211
      %p213 = scmp.eq.s32.totalorder %s31, 0
      %p214 = por %p212, %p213
      %p215 = scmp.le.s32.totalorder 1, %s25
      %p216 = scmp.lt.s32.totalorder %s25, 3
      %p217 = pnand %p215, %p216
      %p218 = pneg %p217
      // Predicated region
      $region9: #{tpu_custom_call.1} parent=5 // pred_check
        _
      $region10: #{tpu_custom_call.1} parent=5 // pred_check_branch
        %220 = sbr.rel (%p217) target = $region12
      $region11: #{tpu_custom_call.1} parent=5 // pred_region
        %s221 = ssub.s32 %s25, 1
      $region12: #{tpu_custom_call.1} parent=5 // pred_fallthru
        _
      %p222 = scmp.lt.s32.totalorder %s25, 2
      // Predicated region
      $region13: #{tpu_custom_call.1} parent=5 // pred_check
        %p223 = pneg %p222
      $region14: #{tpu_custom_call.1} parent=5 // pred_check_branch
        %225 = sbr.rel (%p223) target = $region16
      $region15: #{tpu_custom_call.1} parent=5 // pred_region
        // Predicated region
        $region17: #{tpu_custom_call.1} parent=15 // pred_check
          %p226 = pneg %p45
        $region18: #{tpu_custom_call.1} parent=15 // pred_check_branch
          %228 = sbr.rel (%p226) target = $region20
        $region19: #{tpu_custom_call.1} parent=15 // pred_region
          %s229 = sand.u32 %s35, 1
          %s230 = scalar_lea.sflag [#allocation4], %s229
          %s231 = sand.u32 %s35, 1
          %s232 = smul.addr %s231, 8
          %s233 = scalar_lea.vmem [#allocation3], %s232
          %235 = vsyncadd %s230, 0
          %s236 = smul.addr %s25, 8
          %s237 = scalar_lea.hbm %s0, %s236
          %s239 = sshll.u32 %s237, 4
          %s240 = int_to_ptr.hbm [resolvable:$true] %s239
          %s241 = sshll.u32 %s233, 4
          %s242 = int_to_ptr.vmem [resolvable:$true] %s241
          %244 = dma.hbm_to_vmem [thread:$0]  %s240, 128, %s242, %s230
        $region20: #{tpu_custom_call.1} parent=15 // pred_fallthru
          _
        // Predicated region
        $region21: #{tpu_custom_call.1} parent=15 // pred_check
          %p245 = pneg %p71
        $region22: #{tpu_custom_call.1} parent=15 // pred_check_branch
          %247 = sbr.rel (%p245) target = $region24
        $region23: #{tpu_custom_call.1} parent=15 // pred_region
          %s248 = sand.u32 %s25, 1
          %s249 = scalar_lea.sflag [#allocation7], %s248
          %s250 = sand.u32 %s61, 1
          %s251 = smul.addr %s250, 16
          %s252 = scalar_lea.vmem [#allocation6], %s251
          %254 = vsyncadd %s249, 0
          %s255 = smul.addr %s25, 2
          %s256 = smul.addr %s255, 8
          %s257 = scalar_lea.hbm %s1, %s256
          %s258 = sshll.u32 %s257, 4
          %s259 = int_to_ptr.hbm [resolvable:$true] %s258
          %s260 = sshll.u32 %s252, 4
          %s261 = int_to_ptr.vmem [resolvable:$true] %s260
          %266 = dma.hbm_to_vmem [thread:$0]  %s259, 256, %s261, %s249, 128, 128, 8
        $region24: #{tpu_custom_call.1} parent=15 // pred_fallthru
          _
        // Predicated region
        $region25: #{tpu_custom_call.1} parent=15 // pred_check
          %p267 = pneg %p97
        $region26: #{tpu_custom_call.1} parent=15 // pred_check_branch
          %269 = sbr.rel (%p267) target = $region28
        $region27: #{tpu_custom_call.1} parent=15 // pred_region
          %s270 = sand.u32 %s25, 1
          %s271 = scalar_lea.sflag [#allocation7], %s270
          %s272 = sand.u32 %s87, 1
          %s273 = smul.addr %s272, 32
          %s274 = scalar_lea.vmem [#allocation8], %s273
          %276 = vsyncadd %s271, 0
          %s277 = smul.addr %s25, 4
          %s278 = smul.addr %s277, 8
          %s279 = scalar_lea.hbm %s2, %s278
          %s280 = sshll.u32 %s279, 4
          %s281 = int_to_ptr.hbm [resolvable:$true] %s280
          %s282 = sshll.u32 %s274, 4
          %s283 = int_to_ptr.vmem [resolvable:$true] %s282
          %288 = dma.hbm_to_vmem [thread:$0]  %s281, 512, %s283, %s271, 128, 128, 8
        $region28: #{tpu_custom_call.1} parent=15 // pred_fallthru
          _
        // Predicated region
        $region29: #{tpu_custom_call.1} parent=15 // pred_check
          %p289 = pneg %p123
        $region30: #{tpu_custom_call.1} parent=15 // pred_check_branch
          %291 = sbr.rel (%p289) target = $region32
        $region31: #{tpu_custom_call.1} parent=15 // pred_region
          %p292 = scmp.lt.s32.totalorder %s25, 1
          %s293 = scalar_select %p292, %s25, 1
          %s294 = scalar_lea.vmem %s3, %s293
        $region32: #{tpu_custom_call.1} parent=15 // pred_fallthru
          _
      $region16: #{tpu_custom_call.1} parent=5 // pred_fallthru
        _
      %p295 = scmp.le.s32.totalorder 1, %s25
      %p296 = scmp.lt.s32.totalorder %s25, 3
      %p297 = pnand %p295, %p296
      %p298 = pneg %p297
      // Predicated region
      $region33: #{tpu_custom_call.1} parent=5 // pred_check
        _
      $region34: #{tpu_custom_call.1} parent=5 // pred_check_branch
        %300 = sbr.rel (%p297) target = $region36
      $region35: #{tpu_custom_call.1} parent=5 // pred_region
        %s301 = ssub.s32 %s25, 1
        %s302 = sand.u32 %s38, 1
        %s303 = scalar_lea.sflag [#allocation4], %s302
        %s304 = sand.u32 %s38, 1
        %s305 = smul.addr %s304, 8
        %s306 = scalar_lea.vmem [#allocation3], %s305
        // Predicated region
        $region37: #{tpu_custom_call.1} parent=35 // pred_check
          %p307 = pneg %p51
        $region38: #{tpu_custom_call.1} parent=35 // pred_check_branch
          %309 = sbr.rel (%p307) target = $region40
        $region39: #{tpu_custom_call.1} parent=35 // pred_region
          %311 = dma.done %s303, 128
        $region40: #{tpu_custom_call.1} parent=35 // pred_fallthru
          _
        %s312 = sand.u32 %s30, 1
        %s313 = scalar_lea.sflag [#allocation7], %s312
        %s314 = sand.u32 %s64, 1
        %s315 = smul.addr %s314, 16
        %s316 = scalar_lea.vmem [#allocation6], %s315
        // Predicated region
        $region41: #{tpu_custom_call.1} parent=35 // pred_check
          %p317 = pneg %p77
        $region42: #{tpu_custom_call.1} parent=35 // pred_check_branch
          %319 = sbr.rel (%p317) target = $region44
        $region43: #{tpu_custom_call.1} parent=35 // pred_region
          %321 = dma.done %s313, 256
        $region44: #{tpu_custom_call.1} parent=35 // pred_fallthru
          _
        %s322 = sand.u32 %s30, 1
        %s323 = scalar_lea.sflag [#allocation7], %s322
        %s324 = sand.u32 %s90, 1
        %s325 = smul.addr %s324, 32
        %s326 = scalar_lea.vmem [#allocation8], %s325
        // Predicated region
        $region45: #{tpu_custom_call.1} parent=35 // pred_check
          %p327 = pneg %p103
        $region46: #{tpu_custom_call.1} parent=35 // pred_check_branch
          %329 = sbr.rel (%p327) target = $region48
        $region47: #{tpu_custom_call.1} parent=35 // pred_region
          %331 = dma.done %s323, 512
        $region48: #{tpu_custom_call.1} parent=35 // pred_fallthru
          _
        %s332 = sand.u32 %s38, 1
        %s333 = scalar_lea.sflag [#allocation4], %s332
        %s334 = sand.u32 %s38, 1
        %s335 = smul.addr %s334, 8
        %s336 = scalar_lea.vmem [#allocation3], %s335
        %p337 = pneg %p51
        %p338 = pneg %p48
        %s339 = sand.u32 %s30, 1
        %s340 = scalar_lea.sflag [#allocation7], %s339
        %s341 = sand.u32 %s64, 1
        %s342 = smul.addr %s341, 16
        %s343 = scalar_lea.vmem [#allocation6], %s342
        %p344 = pneg %p77
        %p345 = pneg %p74
        %s346 = sand.u32 %s30, 1
        %s347 = scalar_lea.sflag [#allocation7], %s346
        %s348 = sand.u32 %s90, 1
        %s349 = smul.addr %s348, 32
        %s350 = scalar_lea.vmem [#allocation8], %s349
        %p351 = pneg %p103
        %p352 = pneg %p100
        %p353 = scmp.lt.s32.totalorder %s30, 1
        %s354 = scalar_select %p353, %s30, 1
        %s355 = scalar_lea.vmem %s3, %s354
        %p356 = pneg %p129
        %p357 = pneg %p126
        %p358 = pneg %p155
        %p359 = pneg %p152
        %s360 = sand.u32 %s142, 1
        %s361 = scalar_lea.sflag [#allocation5], %s360
        %s362 = sand.u32 %s142, 1
        %s363 = smul.addr %s362, 8
        %s364 = scalar_lea.vmem [#allocation9], %s363
        %p365 = pneg %p181
        %p366 = pneg %p178
        %s367 = sand.u32 %s30, 1
        %s368 = scalar_lea.sflag [#allocation11], %s367
        %s369 = sand.u32 %s168, 1
        %s370 = scalar_lea.vmem [#allocation10], %s369
        %p371 = pneg %p207
        %p372 = pneg %p204
        %s373 = sand.u32 %s30, 1
        %s374 = scalar_lea.sflag [#allocation11], %s373
        %s375 = sand.u32 %s194, 1
        %s376 = scalar_lea.vmem [#allocation12], %s375
        %p377 = scmp.lt.s32.totalorder %s30, 1
        %s378 = scalar_select %p377, %s30, 1
        %s379 = scalar_lea.vmem %s3, %s378
        %v380 = vld [vmem:[%s326] sm:$0xff]
        %v381 = vld [vmem:[%s326 + $0x8] sm:$0xff]
        %v382 = vld [vmem:[%s326 + $0x10] sm:$0xff]
        %v383 = vld [vmem:[%s326 + $0x18] sm:$0xff]
        %v384 = vld [vmem:[%s379] sm:$0x1]
        %v385 = vld [vmem:[%s306] sm:$0xff]
        %v386 = vld [vmem:[%s316] sm:$0xff]
        %v387 = vld [vmem:[%s316 + $0x8] sm:$0xff]
        %v389 = vperm.slane %v384, 0
        %vm391 = vcmask 130048
        %v393 = vsel %vm391, %v385, 0
        %395 = vmatpush.msra.mxu0 0.0
        %396 = vmatpush.msra.mxu0 0.0
        %397 = vmatpush.msra.mxu0 0.0
        %398 = vmatpush.msra.mxu0 0.0
        %399 = vmatpush.msra.mxu0 0.0
        %400 = vmatpush.msra.mxu0 0.0
        %401 = vmatpush.msra.mxu0 0.0
        %402 = vmatpush.msra.mxu0 0.0
        %403 = vmatpush.msra.mxu0 0.0
        %404 = vmatpush.msra.mxu0 0.0
        %405 = vmatpush.msra.mxu0 0.0
        %406 = vmatpush.msra.mxu0 0.0
        %407 = vmatpush.msra.mxu0 0.0
        %408 = vmatpush.msra.mxu0 0.0
        %409 = vmatpush.msra.mxu0 %v387
        %410 = vmatpush.msra.mxu0 %v386
        %411 = vmatmul.f32.gmra.mxu0 %v393
        %v412 = vpop.f32.mrf.mxu0
        %v413 = vadd.f32 %v389, %v412
        %414 = vdwg.mxu0
        %415 = vst [vmem:[#allocation2] sm:$0xff] %v413
        %v416 = vld [vmem:[#allocation2] sm:$0x1]
        %vm417 = vcmask 261120
        %v419 = vsel %vm417, 0.0, 0
        %421 = vmatpush.msra.mxu0 0.0
        %422 = vmatpush.msra.mxu0 0.0
        %423 = vmatpush.msra.mxu0 0.0
        %424 = vmatpush.msra.mxu0 0.0
        %425 = vmatpush.msra.mxu0 0.0
        %426 = vmatpush.msra.mxu0 0.0
        %427 = vmatpush.msra.mxu0 0.0
        %428 = vmatpush.msra.mxu0 0.0
        %429 = vmatpush.msra.mxu0 0.0
        %430 = vmatpush.msra.mxu0 0.0
        %431 = vmatpush.msra.mxu0 0.0
        %432 = vmatpush.msra.mxu0 0.0
        %433 = vmatpush.msra.mxu0 %v383
        %434 = vmatpush.msra.mxu0 %v382
        %435 = vmatpush.msra.mxu0 %v381
        %436 = vmatpush.msra.mxu0 %v380
        %437 = vmatmul.f32.gmra.mxu0 %v419
        %v438 = vpop.f32.mrf.mxu0
        %v439 = vadd.f32 0.0, %v438
        %440 = vdwg.mxu0
        %v441 = vadd.f32 %v416, %v439
        %v442 = vxor.u32 %v441, 2147483648
        %v443 = vmul.f32 %v442, 1.442695
        %v444 = vpow.pop %v443
        %v445 = vadd.f32 %v444, 1.0
        %v446 = vrcp.pop %v445
        %v447 = vmul.f32 %v445, %v446
        %v448 = vsub.f32 1.0, %v447
        %v449 = vmul.f32 %v446, %v448
        %v450 = vadd.f32 %v446, %v449
        %vm451 = vweird.f32 %v445
        %vm452 = vweird.f32 %v446
        %vm453 = vmor %vm451, %vm452
        %v454 = vsel %vm453, %v446, %v450
        %v455 = vand.u32 2147483647, %v445
        %vm456 = vcmp.eq.f32.partialorder %v455, 8.507059e+37
        %v457 = vand.u32 %v445, 2147483648
        %v458 = vor.u32 1.1754944e-38, %v457
        %v459 = vsel %vm456, %v458, %v454
        %v460 = vmul.f32 1.0, %v459
        %v461 = vtanh.pop %v441
        %v462 = vmul.f32 %v460, 0.0
        %464 = vrot.lane.b32.xlu0 %v461, 64
        %v465 = vpop.permute.xlu0 %464
        %v467 = vmul.f32 %v460, %v465
        %469 = vrot.lane.b32.xlu0 %v467, 32
        %v470 = vpop.permute.xlu0 %469
        %v472 = vadd.f32 %v462, %v470
        %v473 = vtanh.pop %v472
        %475 = vrot.lane.b32.xlu0 %v473, 64
        %v476 = vpop.permute.xlu0 %475
        %v478 = vmul.f32 %v460, %v476
        %s479 = sadd.s32 0, 1
        %s480 = scalar_lea.vmem [#allocation2], %s479
        %v481 = vld [vmem:[%s480] sm:$0x1]
        %483 = vrot.lane.b32.xlu0 %v478, 32
        %v484 = vpop.permute.xlu0 %483
        %v485 = vsel %vm417, %v484, 0
        %487 = vmatpush.msra.mxu0 0.0
        %488 = vmatpush.msra.mxu0 0.0
        %489 = vmatpush.msra.mxu0 0.0
        %490 = vmatpush.msra.mxu0 0.0
        %491 = vmatpush.msra.mxu0 0.0
        %492 = vmatpush.msra.mxu0 0.0
        %493 = vmatpush.msra.mxu0 0.0
        %494 = vmatpush.msra.mxu0 0.0
        %495 = vmatpush.msra.mxu0 0.0
        %496 = vmatpush.msra.mxu0 0.0
        %497 = vmatpush.msra.mxu0 0.0
        %498 = vmatpush.msra.mxu0 0.0
        %499 = vmatpush.msra.mxu0 %v383
        %500 = vmatpush.msra.mxu0 %v382
        %501 = vmatpush.msra.mxu0 %v381
        %502 = vmatpush.msra.mxu0 %v380
        %503 = vmatmul.f32.gmra.mxu0 %v485
        %v504 = vpop.f32.mrf.mxu0
        %v505 = vadd.f32 0.0, %v504
        %506 = vdwg.mxu0
        %v507 = vadd.f32 %v481, %v505
        %v508 = vxor.u32 %v507, 2147483648
        %v509 = vmul.f32 %v508, 1.442695
        %v510 = vpow.pop %v509
        %v511 = vadd.f32 %v510, 1.0
        %v512 = vrcp.pop %v511
        %v513 = vmul.f32 %v511, %v512
        %v514 = vsub.f32 1.0, %v513
        %v515 = vmul.f32 %v512, %v514
        %v516 = vadd.f32 %v512, %v515
        %vm517 = vweird.f32 %v511
        %vm518 = vweird.f32 %v512
        %vm519 = vmor %vm517, %vm518
        %v520 = vsel %vm519, %v512, %v516
        %v521 = vand.u32 2147483647, %v511
        %vm522 = vcmp.eq.f32.partialorder %v521, 8.507059e+37
        %v523 = vand.u32 %v511, 2147483648
        %v524 = vor.u32 1.1754944e-38, %v523
        %v525 = vsel %vm522, %v524, %v520
        %v526 = vmul.f32 1.0, %v525
        %v527 = vtanh.pop %v507
        %v528 = vmul.f32 %v526, %v472
        %530 = vrot.lane.b32.xlu0 %v527, 64
        %v531 = vpop.permute.xlu0 %530
        %v533 = vmul.f32 %v526, %v531
        %535 = vrot.lane.b32.xlu0 %v533, 32
        %v536 = vpop.permute.xlu0 %535
        %v538 = vadd.f32 %v528, %v536
        %v539 = vtanh.pop %v538
        %541 = vrot.lane.b32.xlu0 %v539, 64
        %v542 = vpop.permute.xlu0 %541
        %v544 = vmul.f32 %v526, %v542
        %s545 = sadd.s32 0, 2
        %s546 = scalar_lea.vmem [#allocation2], %s545
        %v547 = vld [vmem:[%s546] sm:$0x1]
        %549 = vrot.lane.b32.xlu0 %v544, 32
        %v550 = vpop.permute.xlu0 %549
        %v551 = vsel %vm417, %v550, 0
        %553 = vmatpush.msra.mxu0 0.0
        %554 = vmatpush.msra.mxu0 0.0
        %555 = vmatpush.msra.mxu0 0.0
        %556 = vmatpush.msra.mxu0 0.0
        %557 = vmatpush.msra.mxu0 0.0
        %558 = vmatpush.msra.mxu0 0.0
        %559 = vmatpush.msra.mxu0 0.0
        %560 = vmatpush.msra.mxu0 0.0
        %561 = vmatpush.msra.mxu0 0.0
        %562 = vmatpush.msra.mxu0 0.0
        %563 = vmatpush.msra.mxu0 0.0
        %564 = vmatpush.msra.mxu0 0.0
        %565 = vmatpush.msra.mxu0 %v383
        %566 = vmatpush.msra.mxu0 %v382
        %567 = vmatpush.msra.mxu0 %v381
        %568 = vmatpush.msra.mxu0 %v380
        %569 = vmatmul.f32.gmra.mxu0 %v551
        %v570 = vpop.f32.mrf.mxu0
        %v571 = vadd.f32 0.0, %v570
        %572 = vdwg.mxu0
        %v573 = vadd.f32 %v547, %v571
        %v574 = vxor.u32 %v573, 2147483648
        %v575 = vmul.f32 %v574, 1.442695
        %v576 = vpow.pop %v575
        %v577 = vadd.f32 %v576, 1.0
        %v578 = vrcp.pop %v577
        %v579 = vmul.f32 %v577, %v578
        %v580 = vsub.f32 1.0, %v579
        %v581 = vmul.f32 %v578, %v580
        %v582 = vadd.f32 %v578, %v581
        %vm583 = vweird.f32 %v577
        %vm584 = vweird.f32 %v578
        %vm585 = vmor %vm583, %vm584
        %v586 = vsel %vm585, %v578, %v582
        %v587 = vand.u32 2147483647, %v577
        %vm588 = vcmp.eq.f32.partialorder %v587, 8.507059e+37
        %v589 = vand.u32 %v577, 2147483648
        %v590 = vor.u32 1.1754944e-38, %v589
        %v591 = vsel %vm588, %v590, %v586
        %v592 = vmul.f32 1.0, %v591
        %v593 = vtanh.pop %v573
        %v594 = vmul.f32 %v592, %v538
        %596 = vrot.lane.b32.xlu0 %v593, 64
        %v597 = vpop.permute.xlu0 %596
        %v599 = vmul.f32 %v592, %v597
        %601 = vrot.lane.b32.xlu0 %v599, 32
        %v602 = vpop.permute.xlu0 %601
        %v604 = vadd.f32 %v594, %v602
        %v605 = vtanh.pop %v604
        %607 = vrot.lane.b32.xlu0 %v605, 64
        %v608 = vpop.permute.xlu0 %607
        %v610 = vmul.f32 %v592, %v608
        %s611 = sadd.s32 0, 3
        %s612 = scalar_lea.vmem [#allocation2], %s611
        %v613 = vld [vmem:[%s612] sm:$0x1]
        %615 = vrot.lane.b32.xlu0 %v610, 32
        %v616 = vpop.permute.xlu0 %615
        %v617 = vsel %vm417, %v616, 0
        %619 = vmatpush.msra.mxu0 0.0
        %620 = vmatpush.msra.mxu0 0.0
        %621 = vmatpush.msra.mxu0 0.0
        %622 = vmatpush.msra.mxu0 0.0
        %623 = vmatpush.msra.mxu0 0.0
        %624 = vmatpush.msra.mxu0 0.0
        %625 = vmatpush.msra.mxu0 0.0
        %626 = vmatpush.msra.mxu0 0.0
        %627 = vmatpush.msra.mxu0 0.0
        %628 = vmatpush.msra.mxu0 0.0
        %629 = vmatpush.msra.mxu0 0.0
        %630 = vmatpush.msra.mxu0 0.0
        %631 = vmatpush.msra.mxu0 %v383
        %632 = vmatpush.msra.mxu0 %v382
        %633 = vmatpush.msra.mxu0 %v381
        %634 = vmatpush.msra.mxu0 %v380
        %635 = vmatmul.f32.gmra.mxu0 %v617
        %v636 = vpop.f32.mrf.mxu0
        %v637 = vadd.f32 0.0, %v636
        %638 = vdwg.mxu0
        %v639 = vadd.f32 %v613, %v637
        %v640 = vxor.u32 %v639, 2147483648
        %v641 = vmul.f32 %v640, 1.442695
        %v642 = vpow.pop %v641
        %v643 = vadd.f32 %v642, 1.0
        %v644 = vrcp.pop %v643
        %v645 = vmul.f32 %v643, %v644
        %v646 = vsub.f32 1.0, %v645
        %v647 = vmul.f32 %v644, %v646
        %v648 = vadd.f32 %v644, %v647
        %vm649 = vweird.f32 %v643
        %vm650 = vweird.f32 %v644
        %vm651 = vmor %vm649, %vm650
        %v652 = vsel %vm651, %v644, %v648
        %v653 = vand.u32 2147483647, %v643
        %vm654 = vcmp.eq.f32.partialorder %v653, 8.507059e+37
        %v655 = vand.u32 %v643, 2147483648
        %v656 = vor.u32 1.1754944e-38, %v655
        %v657 = vsel %vm654, %v656, %v652
        %v658 = vmul.f32 1.0, %v657
        %v659 = vtanh.pop %v639
        %v660 = vmul.f32 %v658, %v604
        %662 = vrot.lane.b32.xlu0 %v659, 64
        %v663 = vpop.permute.xlu0 %662
        %v665 = vmul.f32 %v658, %v663
        %667 = vrot.lane.b32.xlu0 %v665, 32
        %v668 = vpop.permute.xlu0 %667
        %v670 = vadd.f32 %v660, %v668
        %v671 = vtanh.pop %v670
        %673 = vrot.lane.b32.xlu0 %v671, 64
        %v674 = vpop.permute.xlu0 %673
        %v676 = vmul.f32 %v658, %v674
        %s677 = sadd.s32 0, 4
        %s678 = scalar_lea.vmem [#allocation2], %s677
        %v679 = vld [vmem:[%s678] sm:$0x1]
        %681 = vrot.lane.b32.xlu0 %v676, 32
        %v682 = vpop.permute.xlu0 %681
        %v683 = vsel %vm417, %v682, 0
        %685 = vmatpush.msra.mxu0 0.0
        %686 = vmatpush.msra.mxu0 0.0
        %687 = vmatpush.msra.mxu0 0.0
        %688 = vmatpush.msra.mxu0 0.0
        %689 = vmatpush.msra.mxu0 0.0
        %690 = vmatpush.msra.mxu0 0.0
        %691 = vmatpush.msra.mxu0 0.0
        %692 = vmatpush.msra.mxu0 0.0
        %693 = vmatpush.msra.mxu0 0.0
        %694 = vmatpush.msra.mxu0 0.0
        %695 = vmatpush.msra.mxu0 0.0
        %696 = vmatpush.msra.mxu0 0.0
        %697 = vmatpush.msra.mxu0 %v383
        %698 = vmatpush.msra.mxu0 %v382
        %699 = vmatpush.msra.mxu0 %v381
        %700 = vmatpush.msra.mxu0 %v380
        %701 = vmatmul.f32.gmra.mxu0 %v683
        %v702 = vpop.f32.mrf.mxu0
        %v703 = vadd.f32 0.0, %v702
        %704 = vdwg.mxu0
        %v705 = vadd.f32 %v679, %v703
        %v706 = vxor.u32 %v705, 2147483648
        %v707 = vmul.f32 %v706, 1.442695
        %v708 = vpow.pop %v707
        %v709 = vadd.f32 %v708, 1.0
        %v710 = vrcp.pop %v709
        %v711 = vmul.f32 %v709, %v710
        %v712 = vsub.f32 1.0, %v711
        %v713 = vmul.f32 %v710, %v712
        %v714 = vadd.f32 %v710, %v713
        %vm715 = vweird.f32 %v709
        %vm716 = vweird.f32 %v710
        %vm717 = vmor %vm715, %vm716
        %v718 = vsel %vm717, %v710, %v714
        %v719 = vand.u32 2147483647, %v709
        %vm720 = vcmp.eq.f32.partialorder %v719, 8.507059e+37
        %v721 = vand.u32 %v709, 2147483648
        %v722 = vor.u32 1.1754944e-38, %v721
        %v723 = vsel %vm720, %v722, %v718
        %v724 = vmul.f32 1.0, %v723
        %v725 = vtanh.pop %v705
        %v726 = vmul.f32 %v724, %v670
        %728 = vrot.lane.b32.xlu0 %v725, 64
        %v729 = vpop.permute.xlu0 %728
        %v731 = vmul.f32 %v724, %v729
        %733 = vrot.lane.b32.xlu0 %v731, 32
        %v734 = vpop.permute.xlu0 %733
        %v736 = vadd.f32 %v726, %v734
        %v737 = vtanh.pop %v736
        %739 = vrot.lane.b32.xlu0 %v737, 64
        %v740 = vpop.permute.xlu0 %739
        %v742 = vmul.f32 %v724, %v740
        %s743 = sadd.s32 0, 5
        %s744 = scalar_lea.vmem [#allocation2], %s743
        %v745 = vld [vmem:[%s744] sm:$0x1]
        %747 = vrot.lane.b32.xlu0 %v742, 32
        %v748 = vpop.permute.xlu0 %747
        %v749 = vsel %vm417, %v748, 0
        %751 = vmatpush.msra.mxu0 0.0
        %752 = vmatpush.msra.mxu0 0.0
        %753 = vmatpush.msra.mxu0 0.0
        %754 = vmatpush.msra.mxu0 0.0
        %755 = vmatpush.msra.mxu0 0.0
        %756 = vmatpush.msra.mxu0 0.0
        %757 = vmatpush.msra.mxu0 0.0
        %758 = vmatpush.msra.mxu0 0.0
        %759 = vmatpush.msra.mxu0 0.0
        %760 = vmatpush.msra.mxu0 0.0
        %761 = vmatpush.msra.mxu0 0.0
        %762 = vmatpush.msra.mxu0 0.0
        %763 = vmatpush.msra.mxu0 %v383
        %764 = vmatpush.msra.mxu0 %v382
        %765 = vmatpush.msra.mxu0 %v381
        %766 = vmatpush.msra.mxu0 %v380
        %767 = vmatmul.f32.gmra.mxu0 %v749
        %v768 = vpop.f32.mrf.mxu0
        %v769 = vadd.f32 0.0, %v768
        %770 = vdwg.mxu0
        %v771 = vadd.f32 %v745, %v769
        %v772 = vxor.u32 %v771, 2147483648
        %v773 = vmul.f32 %v772, 1.442695
        %v774 = vpow.pop %v773
        %v775 = vadd.f32 %v774, 1.0
        %v776 = vrcp.pop %v775
        %v777 = vmul.f32 %v775, %v776
        %v778 = vsub.f32 1.0, %v777
        %v779 = vmul.f32 %v776, %v778
        %v780 = vadd.f32 %v776, %v779
        %vm781 = vweird.f32 %v775
        %vm782 = vweird.f32 %v776
        %vm783 = vmor %vm781, %vm782
        %v784 = vsel %vm783, %v776, %v780
        %v785 = vand.u32 2147483647, %v775
        %vm786 = vcmp.eq.f32.partialorder %v785, 8.507059e+37
        %v787 = vand.u32 %v775, 2147483648
        %v788 = vor.u32 1.1754944e-38, %v787
        %v789 = vsel %vm786, %v788, %v784
        %v790 = vmul.f32 1.0, %v789
        %v791 = vtanh.pop %v771
        %v792 = vmul.f32 %v790, %v736
        %794 = vrot.lane.b32.xlu0 %v791, 64
        %v795 = vpop.permute.xlu0 %794
        %v797 = vmul.f32 %v790, %v795
        %799 = vrot.lane.b32.xlu0 %v797, 32
        %v800 = vpop.permute.xlu0 %799
        %v802 = vadd.f32 %v792, %v800
        %v803 = vtanh.pop %v802
        %805 = vrot.lane.b32.xlu0 %v803, 64
        %v806 = vpop.permute.xlu0 %805
        %v808 = vmul.f32 %v790, %v806
        %s809 = sadd.s32 0, 6
        %s810 = scalar_lea.vmem [#allocation2], %s809
        %v811 = vld [vmem:[%s810] sm:$0x1]
        %813 = vrot.lane.b32.xlu0 %v808, 32
        %v814 = vpop.permute.xlu0 %813
        %v815 = vsel %vm417, %v814, 0
        %817 = vmatpush.msra.mxu0 0.0
        %818 = vmatpush.msra.mxu0 0.0
        %819 = vmatpush.msra.mxu0 0.0
        %820 = vmatpush.msra.mxu0 0.0
        %821 = vmatpush.msra.mxu0 0.0
        %822 = vmatpush.msra.mxu0 0.0
        %823 = vmatpush.msra.mxu0 0.0
        %824 = vmatpush.msra.mxu0 0.0
        %825 = vmatpush.msra.mxu0 0.0
        %826 = vmatpush.msra.mxu0 0.0
        %827 = vmatpush.msra.mxu0 0.0
        %828 = vmatpush.msra.mxu0 0.0
        %829 = vmatpush.msra.mxu0 %v383
        %830 = vmatpush.msra.mxu0 %v382
        %831 = vmatpush.msra.mxu0 %v381
        %832 = vmatpush.msra.mxu0 %v380
        %833 = vmatmul.f32.gmra.mxu0 %v815
        %v834 = vpop.f32.mrf.mxu0
        %v835 = vadd.f32 0.0, %v834
        %836 = vdwg.mxu0
        %v837 = vadd.f32 %v811, %v835
        %v838 = vxor.u32 %v837, 2147483648
        %v839 = vmul.f32 %v838, 1.442695
        %v840 = vpow.pop %v839
        %v841 = vadd.f32 %v840, 1.0
        %v842 = vrcp.pop %v841
        %v843 = vmul.f32 %v841, %v842
        %v844 = vsub.f32 1.0, %v843
        %v845 = vmul.f32 %v842, %v844
        %v846 = vadd.f32 %v842, %v845
        %vm847 = vweird.f32 %v841
        %vm848 = vweird.f32 %v842
        %vm849 = vmor %vm847, %vm848
        %v850 = vsel %vm849, %v842, %v846
        %v851 = vand.u32 2147483647, %v841
        %vm852 = vcmp.eq.f32.partialorder %v851, 8.507059e+37
        %v853 = vand.u32 %v841, 2147483648
        %v854 = vor.u32 1.1754944e-38, %v853
        %v855 = vsel %vm852, %v854, %v850
        %v856 = vmul.f32 1.0, %v855
        %v857 = vtanh.pop %v837
        %v858 = vmul.f32 %v856, %v802
        %860 = vrot.lane.b32.xlu0 %v857, 64
        %v861 = vpop.permute.xlu0 %860
        %v863 = vmul.f32 %v856, %v861
        %865 = vrot.lane.b32.xlu0 %v863, 32
        %v866 = vpop.permute.xlu0 %865
        %v868 = vadd.f32 %v858, %v866
        %v869 = vtanh.pop %v868
        %871 = vrot.lane.b32.xlu0 %v869, 64
        %v872 = vpop.permute.xlu0 %871
        %v874 = vmul.f32 %v856, %v872
        %s875 = sadd.s32 0, 7
        %s876 = scalar_lea.vmem [#allocation2], %s875
        %v877 = vld [vmem:[%s876] sm:$0x1]
        %879 = vrot.lane.b32.xlu0 %v874, 32
        %v880 = vpop.permute.xlu0 %879
        %v881 = vsel %vm417, %v880, 0
        %883 = vmatpush.msra.mxu0 0.0
        %884 = vmatpush.msra.mxu0 0.0
        %885 = vmatpush.msra.mxu0 0.0
        %886 = vmatpush.msra.mxu0 0.0
        %887 = vmatpush.msra.mxu0 0.0
        %888 = vmatpush.msra.mxu0 0.0
        %889 = vmatpush.msra.mxu0 0.0
        %890 = vmatpush.msra.mxu0 0.0
        %891 = vmatpush.msra.mxu0 0.0
        %892 = vmatpush.msra.mxu0 0.0
        %893 = vmatpush.msra.mxu0 0.0
        %894 = vmatpush.msra.mxu0 0.0
        %895 = vmatpush.msra.mxu0 %v383
        %896 = vmatpush.msra.mxu0 %v382
        %897 = vmatpush.msra.mxu0 %v381
        %898 = vmatpush.msra.mxu0 %v380
        %899 = vmatmul.f32.gmra.mxu0 %v881
        %v900 = vpop.f32.mrf.mxu0
        %v901 = vadd.f32 0.0, %v900
        %902 = vdwg.mxu0
        %v903 = vadd.f32 %v877, %v901
        %v904 = vxor.u32 %v903, 2147483648
        %v905 = vmul.f32 %v904, 1.442695
        %v906 = vpow.pop %v905
        %v907 = vadd.f32 %v906, 1.0
        %v908 = vrcp.pop %v907
        %v909 = vmul.f32 %v907, %v908
        %v910 = vsub.f32 1.0, %v909
        %v911 = vmul.f32 %v908, %v910
        %v912 = vadd.f32 %v908, %v911
        %vm913 = vweird.f32 %v907
        %vm914 = vweird.f32 %v908
        %vm915 = vmor %vm913, %vm914
        %v916 = vsel %vm915, %v908, %v912
        %v917 = vand.u32 2147483647, %v907
        %vm918 = vcmp.eq.f32.partialorder %v917, 8.507059e+37
        %v919 = vand.u32 %v907, 2147483648
        %v920 = vor.u32 1.1754944e-38, %v919
        %v921 = vsel %vm918, %v920, %v916
        %v922 = vmul.f32 1.0, %v921
        %v923 = vtanh.pop %v903
        %v924 = vmul.f32 %v922, %v868
        %926 = vrot.lane.b32.xlu0 %v923, 64
        %v927 = vpop.permute.xlu0 %926
        %v929 = vmul.f32 %v922, %v927
        %931 = vrot.lane.b32.xlu0 %v929, 32
        %v932 = vpop.permute.xlu0 %931
        %v934 = vadd.f32 %v924, %v932
        %v935 = vtanh.pop %v934
        %937 = vrot.lane.b32.xlu0 %v935, 64
        %v938 = vpop.permute.xlu0 %937
        %v940 = vmul.f32 %v922, %v938
        %v941 = vrot.slane %v544, 7
        %v943 = vrot.slane %v610, 6
        %v945 = vrot.slane %v676, 5
        %v947 = vrot.slane %v742, 4
        %v949 = vrot.slane %v808, 3
        %v951 = vrot.slane %v874, 2
        %v954 = vrot.slane %v940, 1
        %vm956 = vcmask 1040384
        %v957 = vsel %vm956, %v478, %v941
        %vm958 = vcmask 1041408
        %v959 = vsel %vm958, %v957, %v943
        %vm960 = vcmask 1042432
        %v961 = vsel %vm960, %v959, %v945
        %vm962 = vcmask 1043456
        %v963 = vsel %vm962, %v961, %v947
        %vm964 = vcmask 1044480
        %v965 = vsel %vm964, %v963, %v949
        %vm966 = vcmask 1045504
        %v967 = vsel %vm966, %v965, %v951
        %vm968 = vcmask 1046528
        %v969 = vsel %vm968, %v967, %v954
        %971 = vrot.lane.b32.xlu0 %v969, 32
        %v972 = vpop.permute.xlu0 %971
        %974 = vst.msk [vmem:[%s364] sm:$0xff] %vm417, %v972
        %975 = vrot.lane.b32.xlu0 %v940, 32
        %v976 = vpop.permute.xlu0 %975
        %vm978 = vcmask 253952
        %979 = vst.msk [vmem:[%s370] sm:$0x1] %vm978, %v976
        %981 = vrot.lane.b32.xlu0 %v934, 96
        %v982 = vpop.permute.xlu0 %981
        %984 = vst.msk [vmem:[%s376] sm:$0x1] %vm978, %v982
        %s985 = sand.u32 %s142, 1
        %s986 = scalar_lea.sflag [#allocation5], %s985
        %s987 = sand.u32 %s142, 1
        %s988 = smul.addr %s987, 8
        %s989 = scalar_lea.vmem [#allocation9], %s988
        %s990 = sand.u32 %s30, 1
        %s991 = scalar_lea.sflag [#allocation11], %s990
        %s992 = sand.u32 %s168, 1
        %s993 = scalar_lea.vmem [#allocation10], %s992
        %s994 = sand.u32 %s30, 1
        %s995 = scalar_lea.sflag [#allocation11], %s994
        %s996 = sand.u32 %s194, 1
        %s997 = scalar_lea.vmem [#allocation12], %s996
        // Predicated region
        $region49: #{tpu_custom_call.1} parent=35 // pred_check
          %p998 = pneg %p152
        $region50: #{tpu_custom_call.1} parent=35 // pred_check_branch
          %1000 = sbr.rel (%p998) target = $region52
        $region51: #{tpu_custom_call.1} parent=35 // pred_region
          %1002 = vsyncadd %s986, 0
          %s1003 = smul.addr %s30, 8
          %s1004 = scalar_lea.hbm %s4, %s1003
          %s1006 = sshll.u32 %s989, 4
          %s1007 = int_to_ptr.vmem [resolvable:$true] %s1006
          %s1008 = sshll.u32 %s1004, 4
          %s1009 = int_to_ptr.hbm [resolvable:$true] %s1008
          %1011 = dma.vmem_to_hbm [thread:$0]  %s1007, 128, %s1009, %s986
        $region52: #{tpu_custom_call.1} parent=35 // pred_fallthru
          _
        // Predicated region
        $region53: #{tpu_custom_call.1} parent=35 // pred_check
          %p1012 = pneg %p178
        $region54: #{tpu_custom_call.1} parent=35 // pred_check_branch
          %1014 = sbr.rel (%p1012) target = $region56
        $region55: #{tpu_custom_call.1} parent=35 // pred_region
          %1016 = vsyncadd %s991, 0
          %s1017 = scalar_lea.hbm %s5, %s30
          %s1019 = sshll.u32 %s993, 4
          %s1020 = int_to_ptr.vmem [resolvable:$true] %s1019
          %s1021 = sshll.u32 %s1017, 4
          %s1022 = int_to_ptr.hbm [resolvable:$true] %s1021
          %1024 = dma.vmem_to_hbm [thread:$0]  %s1020, 16, %s1022, %s991
        $region56: #{tpu_custom_call.1} parent=35 // pred_fallthru
          _
        // Predicated region
        $region57: #{tpu_custom_call.1} parent=35 // pred_check
          %p1025 = pneg %p204
        $region58: #{tpu_custom_call.1} parent=35 // pred_check_branch
          %1027 = sbr.rel (%p1025) target = $region60
        $region59: #{tpu_custom_call.1} parent=35 // pred_region
          %1029 = vsyncadd %s995, 0
          %s1030 = scalar_lea.hbm %s6, %s30
          %s1032 = sshll.u32 %s997, 4
          %s1033 = int_to_ptr.vmem [resolvable:$true] %s1032
          %s1034 = sshll.u32 %s1030, 4
          %s1035 = int_to_ptr.hbm [resolvable:$true] %s1034
          %1037 = dma.vmem_to_hbm [thread:$0]  %s1033, 16, %s1035, %s995
        $region60: #{tpu_custom_call.1} parent=35 // pred_fallthru
          _
      $region36: #{tpu_custom_call.1} parent=5 // pred_fallthru
        _
      %p1038 = scmp.le.s32.totalorder 2, %s25
      // Predicated region
      $region61: #{tpu_custom_call.1} parent=5 // pred_check
        %p1039 = pneg %p1038
      $region62: #{tpu_custom_call.1} parent=5 // pred_check_branch
        %1041 = sbr.rel (%p1039) target = $region64
      $region63: #{tpu_custom_call.1} parent=5 // pred_region
        %s1042 = ssub.s32 %s25, 2
        // Predicated region
        $region65: #{tpu_custom_call.1} parent=63 // pred_check
          %p1043 = pneg %p158
        $region66: #{tpu_custom_call.1} parent=63 // pred_check_branch
          %1045 = sbr.rel (%p1043) target = $region68
        $region67: #{tpu_custom_call.1} parent=63 // pred_region
          %s1046 = sand.u32 %s143, 1
          %s1047 = scalar_lea.sflag [#allocation5], %s1046
          %s1048 = sand.u32 %s143, 1
          %s1049 = smul.addr %s1048, 8
          %s1050 = scalar_lea.vmem [#allocation9], %s1049
          %1052 = dma.done %s1047, 128
        $region68: #{tpu_custom_call.1} parent=63 // pred_fallthru
          _
        // Predicated region
        $region69: #{tpu_custom_call.1} parent=63 // pred_check
          %p1053 = pneg %p184
        $region70: #{tpu_custom_call.1} parent=63 // pred_check_branch
          %1055 = sbr.rel (%p1053) target = $region72
        $region71: #{tpu_custom_call.1} parent=63 // pred_region
          %s1056 = sand.u32 %s31, 1
          %s1057 = scalar_lea.sflag [#allocation11], %s1056
          %s1058 = sand.u32 %s169, 1
          %s1059 = scalar_lea.vmem [#allocation10], %s1058
          %1061 = dma.done %s1057, 16
        $region72: #{tpu_custom_call.1} parent=63 // pred_fallthru
          _
        // Predicated region
        $region73: #{tpu_custom_call.1} parent=63 // pred_check
          %p1062 = pneg %p210
        $region74: #{tpu_custom_call.1} parent=63 // pred_check_branch
          %1064 = sbr.rel (%p1062) target = $region76
        $region75: #{tpu_custom_call.1} parent=63 // pred_region
          %s1065 = sand.u32 %s31, 1
          %s1066 = scalar_lea.sflag [#allocation11], %s1065
          %s1067 = sand.u32 %s195, 1
          %s1068 = scalar_lea.vmem [#allocation12], %s1067
          %1070 = dma.done %s1066, 16
        $region76: #{tpu_custom_call.1} parent=63 // pred_fallthru
          _
      $region64: #{tpu_custom_call.1} parent=5 // pred_fallthru
        _
    $region6: #{tpu_custom_call.1} parent=1 // loop_footer
      %s29 = sadd.s32 1, %s25
    $region7: #{tpu_custom_call.1} parent=1 // loop_footer_branch
      %24 = sbr.rel target = $region3
    $region8: #{tpu_custom_call.1} parent=1 // loop_exit
      _
    %1071 = vsyncpa [#allocation4], 1
    %s1072 = scalar_lea.sflag [#allocation4], 1
    %1073 = vsyncpa %s1072, 1
    %1074 = vsyncpa [#allocation7], 1
    %s1075 = scalar_lea.sflag [#allocation7], 1
    %1076 = vsyncpa %s1075, 1
    %1077 = vsyncpa [#allocation5], 1
    %s1078 = scalar_lea.sflag [#allocation5], 1
    %1079 = vsyncpa %s1078, 1
    %1080 = vsyncpa [#allocation11], 1
    %s1081 = scalar_lea.sflag [#allocation11], 1
    %1082 = vsyncpa %s1081, 1

</llo_original>
